<compile_context>
chip_gen: v7x
topology: tpu7x:2x2x1
jax: 0.10.0
libtpu: 0.0.40
codegen_flags: <defaults>
</compile_context>

<pallas_src>
import functools

import jax
import jax.numpy as jnp
import numpy as np
from jax.experimental import pallas as pl
from jax.experimental.pallas import tpu as pltpu

ROW_ALIGN = 16          # bf16 sublane packing for the x / word_dist batch tiles
LANE = 128


def _round_up(x, m):
    return (x + m - 1) // m * m


def _softplus(z):
    # numerically stable softplus (VPU + EUP)
    return jnp.maximum(z, 0.0) + jnp.log(1.0 + jnp.exp(-jnp.abs(z)))


# ---------------------------------------------------------------------------
# Fused kernel: inference MLPs -> reparameterize + softmax -> ProdLDA decode -> loss
# ---------------------------------------------------------------------------
def decoder_fused_kernel(x_ref, eps_ref, w1_ref, b1_ref, w2_ref, b2_ref,
                         wo_ref, bo_ref, beta_ref, consts_ref,
                         theta_ref, wd_ref, stats_ref,
                         *, n_components, k_pad, kl_mult):
    # ---- fused mu/sigma inference MLPs (packed weights, bf16 MXU, f32 accumulate) ----
    xb = x_ref[...]                                                     # (TB, V) bf16
    h1 = _softplus(jnp.dot(xb, w1_ref[...],
                           preferred_element_type=jnp.float32) + b1_ref[...])     # (TB, 2H)
    h2 = _softplus(jnp.dot(h1.astype(jnp.bfloat16), w2_ref[...],
                           preferred_element_type=jnp.float32) + b2_ref[...])     # (TB, 2H)
    # merged heads: one (2H, 2*Kp) matmul, split at the lane-128 (Kp) vreg boundary
    heads = jnp.dot(h2.astype(jnp.bfloat16), wo_ref[...],
                    preferred_element_type=jnp.float32) + bo_ref[...]             # (TB, 2Kp)
    mu = heads[:, :k_pad]                                               # (TB, Kp)
    log_sigma = heads[:, k_pad:]                                        # (TB, Kp)
    sigma = jnp.exp(log_sigma)                 # scale of Normal(mu, exp(log_sigma))

    # ---- ThetaVAE: reparameterize + softmax over the real K lanes (padded lanes masked) --
    tb = mu.shape[0]
    z = mu + sigma * eps_ref[...]
    klane = jax.lax.broadcasted_iota(jnp.int32, (tb, k_pad), 1) < n_components
    zmax = jnp.max(jnp.where(klane, z, -jnp.inf), axis=-1, keepdims=True)
    ez_t = jnp.where(klane, jnp.exp(z - zmax), 0.0)
    theta = ez_t * pl.reciprocal(jnp.sum(ez_t, axis=-1, keepdims=True), approx=False)
    theta_ref[...] = theta

    # ---- ProdLDA decode: word_dist = softmax(theta @ beta); log-softmax shared with loss --
    logits = jnp.dot(theta.astype(jnp.bfloat16), beta_ref[...],
                     preferred_element_type=jnp.float32)                # (TB, V)
    shifted = logits - jnp.max(logits, axis=-1, keepdims=True)
    ez = jnp.exp(shifted)
    ssum = jnp.sum(ez, axis=-1, keepdims=True)
    wd_ref[...] = (ez * pl.reciprocal(ssum, approx=True)).astype(wd_ref.dtype)  # bf16 out
    log_wd = shifted - jnp.log(ssum)            # exact log-softmax for the loss

    # ---- loss: reconstruction NLL + kl_mult * KL(posterior || gaussian prior) ----
    xf = x_ref[...].astype(jnp.float32)          # re-read: short live range across epilogue
    nll = -jnp.sum(xf * log_wd, axis=-1, keepdims=True)                 # (TB, 1)
    consts = consts_ref[...]
    qmean = consts[0:1, :]
    inv_qvar2 = consts[1:2, :]                   # 1 / prior_variance^2 (0 on padded lanes)
    log_qvar2 = consts[2:3, :]                   # log(prior_variance^2) (0 on padded lanes)
    # kl_divergence(p_mean=mu, p_variance=exp(log_sigma), q_mean, q_variance), with
    # log(p_variance^2) = 2*log_sigma; padded lanes contribute exactly 0.
    kl_terms = ((sigma * sigma) * inv_qvar2
                + (qmean - mu) ** 2 * inv_qvar2
                + log_qvar2 - 2.0 * log_sigma)
    kl = 0.5 * (jnp.sum(kl_terms, axis=-1, keepdims=True) - float(n_components))

    # lane-dense stats output: lane 0 = nll, lane 1 = kl, lane 2 = per-sample loss
    lane = jax.lax.broadcasted_iota(jnp.int32, (tb, stats_ref.shape[-1]), 1)
    stats_ref[...] = jnp.where(lane == 0, nll,
                      jnp.where(lane == 1, kl,
                       jnp.where(lane == 2, nll + kl_mult * kl, 0.0)))


# ---------------------------------------------------------------------------
# Spec / sizing helpers
# ---------------------------------------------------------------------------
def _const_spec(shape):
    """Grid-invariant block; single-buffered (revisited every step)."""
    idx = lambda i: (0,) * len(shape)
    if hasattr(pl, "Buffered"):
        try:
            return pl.BlockSpec(shape, idx, pipeline_mode=pl.Buffered(1))
        except TypeError:
            pass
    return pl.BlockSpec(shape, idx)


def _batch_spec(shape):
    return pl.BlockSpec(shape, lambda i: (i,) + (0,) * (len(shape) - 1))


def _vmem_limit_bytes():
    """Per-generation VMEM planning limit (cap ~100 MiB on 128 MiB parts, ~52 MiB on v7x)."""
    phys = None
    try:
        phys = int(pltpu.get_tpu_info().vmem_capacity_bytes)
    except Exception:
        phys = None
    if not phys or phys <= 0:
        phys = 64 * 1024 * 1024          # conservative (v7x-sized) fallback
    return int(max(32 * 1024 * 1024,
                   min(phys - 12 * 1024 * 1024, 100 * 1024 * 1024)))


def _derive_tb(b_rows, V, Hp, Kp, vmem_limit):
    """Pick the largest 16-aligned batch tile whose live VMEM fits the budget."""
    # grid-invariant weights (single-buffered via pl.Buffered(1))
    const_bytes = ((V * Hp + Hp * Hp + Hp * 2 * Kp + Kp * V) * 2
                   + (2 * Hp + 2 * Kp + 8 * Kp) * 4)
    # per-batch-row residency: double-buffered bf16 x + bf16 word_dist tiles, ~4 live f32
    # (row, V) temporaries in the decode epilogue, plus (row, Kp)-class f32 intermediates.
    per_row = 2 * 2 * (V * 2) + 4 * V * 4 + 10 * Kp * 4 + 2 * LANE * 4
    budget = int(vmem_limit * 0.75) - const_bytes
    tb = budget // per_row if budget > 0 else ROW_ALIGN
    tb = max(ROW_ALIGN, min(512, (tb // ROW_ALIGN) * ROW_ALIGN))
    return min(tb, b_rows)


# ---------------------------------------------------------------------------
# pallas_call wrapper
# ---------------------------------------------------------------------------
def run_decoder_fused(x_bow, eps, packed, *, n_components, k_pad, kl_mult):
    B, V = x_bow.shape
    Kp = k_pad
    Hp = packed["w1"].shape[1]

    vmem_limit = _vmem_limit_bytes()
    B_al = _round_up(B, ROW_ALIGN)
    TB = _derive_tb(B_al, V, Hp, Kp, vmem_limit)
    # prefer >= 2 grid steps (v7x has 2 TensorCores) when the batch allows it
    if B_al > ROW_ALIGN and B_al <= TB:
        TB = _round_up(max(ROW_ALIGN, B_al // 2), ROW_ALIGN)
    B_pad = _round_up(B_al, TB)
    grid = (B_pad // TB,)

    # bf16 x input (halves the x DMA); zero-pad batch rows / K lanes of eps
    xb = jnp.zeros((B_pad, V), jnp.bfloat16).at[:B, :].set(x_bow.astype(jnp.bfloat16))
    eps_p = jnp.zeros((B_pad, Kp), jnp.float32).at[:B, :n_components].set(eps)

    kern = functools.partial(decoder_fused_kernel, n_components=n_components,
                             k_pad=Kp, kl_mult=float(kl_mult))

    theta_p, word_dist_p, stats_p = pl.pallas_call(
        kern,
        out_shape=(jax.ShapeDtypeStruct((B_pad, Kp), jnp.float32),
                   jax.ShapeDtypeStruct((B_pad, V), jnp.bfloat16),
                   jax.ShapeDtypeStruct((B_pad, LANE), jnp.float32)),
        grid=grid,
        in_specs=[_batch_spec((TB, V)),            # x_bow (bf16)
                  _batch_spec((TB, Kp)),           # eps
                  _const_spec((V, Hp)),            # w1 (mu||sigma, padded)
                  _const_spec((1, Hp)),            # b1
                  _const_spec((Hp, Hp)),           # w2 (block-diagonal)
                  _const_spec((1, Hp)),            # b2
                  _const_spec((Hp, 2 * Kp)),       # merged heads (mu lanes | sigma lanes)
                  _const_spec((1, 2 * Kp)),        # merged head biases
                  _const_spec((Kp, V)),            # beta (row-padded)
                  _const_spec((8, Kp))],           # packed prior constants
        out_specs=(_batch_spec((TB, Kp)),
                   _batch_spec((TB, V)),
                   _batch_spec((TB, LANE))),
        compiler_params=pltpu.CompilerParams(
            dimension_semantics=("parallel",),
            vmem_limit_bytes=vmem_limit),
    )(xb, eps_p,
      packed["w1"], packed["b1"], packed["w2"], packed["b2"],
      packed["wo"], packed["bo"], packed["beta"], packed["consts"])

    theta = theta_p[:B, :n_components]
    word_dist = word_dist_p[:B, :]
    nll = stats_p[:B, 0]
    loss_ps = stats_p[:B, 2]
    return theta, word_dist, nll, loss_ps


# ---------------------------------------------------------------------------
# Parameter init (two independent InferenceNetworks, as in the reference module)
# and packing for the fused kernel.
# ---------------------------------------------------------------------------
def init_inference_params(key, input_size, hidden, n_components):
    ks = jax.random.split(key, 3)
    return {
        "w1": 0.02 * jax.random.normal(ks[0], (input_size, hidden), jnp.float32),
        "b1": jnp.zeros((hidden,), jnp.float32),
        "w2": 0.02 * jax.random.normal(ks[1], (hidden, hidden), jnp.float32),
        "b2": jnp.zeros((hidden,), jnp.float32),
        "wo": 0.02 * jax.random.normal(ks[2], (hidden, n_components), jnp.float32),
        "bo": jnp.zeros((n_components,), jnp.float32),
    }


def init_decoder_network(key, input_size, hidden, n_components):
    kmu, ksig, kbeta = jax.random.split(key, 3)
    return {
        "mu_inference": init_inference_params(kmu, input_size, hidden, n_components),
        "sigma_inference": init_inference_params(ksig, input_size, hidden, n_components),
        # initialization == 'normal': beta = 0.02 * randn(K, V)
        "beta": 0.02 * jax.random.normal(kbeta, (n_components, input_size), jnp.float32),
        # prior == 'gaussian' (non-trainable buffers)
        "prior_mean": jnp.zeros((n_components,), jnp.float32),
        "prior_variance": jnp.ones((n_components,), jnp.float32),
    }


def pack_params(params, *, k_pad, h_half_pad):
    """Pack the two independent MLPs into padded / block-diagonal matrices (bf16 for the
    MXU, f32 accumulation in-kernel), merge the two heads into one lane-split weight, and
    precompute prior constants into a single (8, Kp) block.  Zero padding is exact: padded
    hidden columns only ever multiply zero weight rows, padded K lanes have zero prior
    constants so their KL contribution is exactly 0, and theta padding is masked in-kernel."""
    mu, sg = params["mu_inference"], params["sigma_inference"]
    V, H = mu["w1"].shape
    K = mu["wo"].shape[1]
    Hh = h_half_pad
    Hp = 2 * Hh
    Kp = k_pad

    def pad_cols(a, cols):
        return jnp.pad(a, ((0, 0), (0, cols - a.shape[1])))

    w1 = jnp.concatenate([pad_cols(mu["w1"], Hh), pad_cols(sg["w1"], Hh)], axis=1)     # (V, 2H)
    b1 = jnp.concatenate([jnp.pad(mu["b1"], (0, Hh - H)),
                          jnp.pad(sg["b1"], (0, Hh - H))])[None, :]                     # (1, 2H)
    w2 = jnp.zeros((Hp, Hp), jnp.float32)
    w2 = w2.at[:H, :H].set(mu["w2"]).at[Hh:Hh + H, Hh:Hh + H].set(sg["w2"])             # (2H, 2H)
    b2 = jnp.concatenate([jnp.pad(mu["b2"], (0, Hh - H)),
                          jnp.pad(sg["b2"], (0, Hh - H))])[None, :]                     # (1, 2H)
    wo = jnp.zeros((Hp, 2 * Kp), jnp.float32)
    wo = wo.at[:H, :K].set(mu["wo"]).at[Hh:Hh + H, Kp:Kp + K].set(sg["wo"])             # (2H, 2Kp)
    bo = jnp.zeros((1, 2 * Kp), jnp.float32)
    bo = bo.at[0, :K].set(mu["bo"]).at[0, Kp:Kp + K].set(sg["bo"])                      # (1, 2Kp)
    beta = jnp.zeros((Kp, V), jnp.float32).at[:K, :].set(params["beta"])                # (Kp, V)

    q_var = params["prior_variance"]
    consts = jnp.zeros((8, Kp), jnp.float32)
    consts = consts.at[0, :K].set(params["prior_mean"])
    consts = consts.at[1, :K].set(1.0 / (q_var * q_var))
    consts = consts.at[2, :K].set(jnp.log(q_var * q_var))

    return {
        "w1": w1.astype(jnp.bfloat16), "b1": b1,
        "w2": w2.astype(jnp.bfloat16), "b2": b2,
        "wo": wo.astype(jnp.bfloat16), "bo": bo,
        "beta": beta.astype(jnp.bfloat16),
        "consts": consts,
    }


# ---------------------------------------------------------------------------
# Metrics glue (host-side, tiny)
# ---------------------------------------------------------------------------
def topic_diversity(beta, topk):
    beta_np = np.asarray(beta)
    top = np.argsort(-beta_np, axis=-1)[:, :topk]
    n_unique = len(np.unique(top))
    return float(n_unique) / float(topk * beta_np.shape[0])


# ---------------------------------------------------------------------------
# Full forward
# ---------------------------------------------------------------------------
def decoder_network_forward(params, x, eps, *, n_components, kl_mult=1.0, topk=(5, 10)):
    x_bow = x["x_bow"]
    K = n_components
    H = params["mu_inference"]["w1"].shape[1]
    Kp = max(LANE, _round_up(K, LANE))      # lane-dense heads / theta
    Hh = max(LANE, _round_up(H, LANE))      # packed 2H is then a multiple of 256

    packed = pack_params(params, k_pad=Kp, h_half_pad=Hh)

    theta, word_dist, nll, loss_ps = run_decoder_fused(
        x_bow, eps, packed, n_components=K, k_pad=Kp, kl_mult=kl_mult)

    beta = params["beta"]                    # ProdLDA returns the raw topic-word matrix
    loss = jnp.mean(loss_ps)

    # perplexity reuses the in-kernel per-sample NLL (no second pass over word_dist)
    tokens = jnp.sum(x_bow)
    perplexity = jnp.exp(jnp.sum(nll) / jnp.maximum(tokens, 1.0))

    # TODO(synk): NPMICoherence.get_coherence needs external sparse corpus co-occurrence
    # statistics; no clean in-kernel equivalent -> coherence kept at 0.
    coherence = 0.0
    diversity = 0.0
    for i, tk in enumerate(topk):
        coherence = coherence * i / (i + 1) + 0.0 / (i + 1)
        diversity = diversity * i / (i + 1) + topic_diversity(beta, tk) / (i + 1)

    print(f"COHERENCE: {coherence}")
    print(f"DIVERSITY: {diversity}")
    print(f"PERPLEXITY: {float(perplexity)}")

    return {
        "loss": loss,
        "theta": theta,
        "beta": beta,
        "word_dist": word_dist,          # bf16 (loss/perplexity use the in-kernel f32 path)
        "coherence": coherence,
        "diversity": diversity,
        "perplexity": perplexity,
    }


if __name__ == "__main__":
    B, V, H, K = 32, 256, 64, 16         # batch, vocab (input_size), hidden, n_components

    root = jax.random.PRNGKey(0)
    k_params, k_bow, k_eps = jax.random.split(root, 3)

    params = init_decoder_network(k_params, input_size=V, hidden=H, n_components=K)
    x_bow = jax.random.randint(k_bow, (B, V), 0, 5).astype(jnp.float32)
    eps = jax.random.normal(k_eps, (B, K), jnp.float32)   # reparameterization noise

    out = decoder_network_forward(params, {"x_bow": x_bow}, eps,
                                  n_components=K, kl_mult=1.0, topk=(5, 10))

    jax.block_until_ready(out["loss"])
    jax.block_until_ready(out["word_dist"])
    jax.block_until_ready(out["theta"])

    assert out["theta"].shape == (B, K)
    assert out["word_dist"].shape == (B, V)
    assert bool(jnp.isfinite(out["loss"]))
    assert bool(jnp.all(jnp.isfinite(out["word_dist"].astype(jnp.float32))))
    assert bool(jnp.all(jnp.isfinite(out["theta"])))

    print("KERNEL_OK")
</pallas_src>

<mosaic_0001>
module attributes {stable_mosaic.version = 11 : i64} {
  func.func @decoder_fused_kernel(%arg0: i32, %arg1: memref<16x256xbf16, #tpu.memory_space<vmem>>, %arg2: memref<16x128xf32, #tpu.memory_space<vmem>>, %arg3: memref<256x256xbf16, #tpu.memory_space<vmem>>, %arg4: memref<1x256xf32, #tpu.memory_space<vmem>>, %arg5: memref<256x256xbf16, #tpu.memory_space<vmem>>, %arg6: memref<1x256xf32, #tpu.memory_space<vmem>>, %arg7: memref<256x256xbf16, #tpu.memory_space<vmem>>, %arg8: memref<1x256xf32, #tpu.memory_space<vmem>>, %arg9: memref<128x256xbf16, #tpu.memory_space<vmem>>, %arg10: memref<8x128xf32, #tpu.memory_space<vmem>>, %arg11: memref<16x128xf32, #tpu.memory_space<vmem>>, %arg12: memref<16x256xbf16, #tpu.memory_space<vmem>>, %arg13: memref<16x128xf32, #tpu.memory_space<vmem>>) attributes {dimension_semantics = [#tpu.dimension_semantics<parallel>], iteration_bounds = array<i64: 2>, scalar_prefetch = 0 : i64, scratch_operands = 0 : i64, tpu.core_type = #tpu.core_type<tc>, window_params = [{transform_indices = @transform_0, window_bounds = array<i64: 16, 256>}, {transform_indices = @transform_1, window_bounds = array<i64: 16, 128>}, {pipeline_mode = #tpu.pipeline_mode<synchronous>, transform_indices = @transform_2, window_bounds = array<i64: 256, 256>}, {pipeline_mode = #tpu.pipeline_mode<synchronous>, transform_indices = @transform_3, window_bounds = array<i64: 1, 256>}, {pipeline_mode = #tpu.pipeline_mode<synchronous>, transform_indices = @transform_4, window_bounds = array<i64: 256, 256>}, {pipeline_mode = #tpu.pipeline_mode<synchronous>, transform_indices = @transform_5, window_bounds = array<i64: 1, 256>}, {pipeline_mode = #tpu.pipeline_mode<synchronous>, transform_indices = @transform_6, window_bounds = array<i64: 256, 256>}, {pipeline_mode = #tpu.pipeline_mode<synchronous>, transform_indices = @transform_7, window_bounds = array<i64: 1, 256>}, {pipeline_mode = #tpu.pipeline_mode<synchronous>, transform_indices = @transform_8, window_bounds = array<i64: 128, 256>}, {pipeline_mode = #tpu.pipeline_mode<synchronous>, transform_indices = @transform_9, window_bounds = array<i64: 8, 128>}, {transform_indices = @transform_10, window_bounds = array<i64: 16, 128>}, {transform_indices = @transform_11, window_bounds = array<i64: 16, 256>}, {transform_indices = @transform_12, window_bounds = array<i64: 16, 128>}]} {
    %c0 = arith.constant 0 : index
    %c0_0 = arith.constant 0 : index
    %0 = vector.load %arg1[%c0, %c0_0] : memref<16x256xbf16, #tpu.memory_space<vmem>>, vector<16x256xbf16>
    %c0_1 = arith.constant 0 : index
    %c0_2 = arith.constant 0 : index
    %1 = vector.load %arg3[%c0_1, %c0_2] : memref<256x256xbf16, #tpu.memory_space<vmem>>, vector<256x256xbf16>
    %cst = arith.constant dense<0.000000e+00> : vector<16x256xf32>
    %2 = tpu.matmul %0, %1, %cst {dimension_numbers = #tpu.dot_dimension_numbers<[1], [0], [0], [1], [0, 0, 1, 1], [], []>} : vector<16x256xbf16>, vector<256x256xbf16>, vector<16x256xf32> -> vector<16x256xf32>
    %c0_3 = arith.constant 0 : index
    %c0_4 = arith.constant 0 : index
    %3 = vector.load %arg4[%c0_3, %c0_4] : memref<1x256xf32, #tpu.memory_space<vmem>>, vector<1x256xf32>
    %4 = vector.broadcast %3 : vector<1x256xf32> to vector<16x256xf32>
    %5 = arith.addf %2, %4 : vector<16x256xf32>
    %cst_5 = arith.constant 0.000000e+00 : f32
    %6 = vector.broadcast %cst_5 : f32 to vector<16x256xf32>
    %7 = arith.maximumf %5, %6 : vector<16x256xf32>
    %8 = math.absf %5 : vector<16x256xf32>
    %cst_6 = arith.constant 0.000000e+00 : f32
    %9 = vector.broadcast %cst_6 : f32 to vector<16x256xf32>
    %10 = arith.subf %9, %8 : vector<16x256xf32>
    %11 = math.exp %10 : vector<16x256xf32>
    %cst_7 = arith.constant 1.000000e+00 : f32
    %12 = vector.broadcast %cst_7 : f32 to vector<16x256xf32>
    %13 = arith.addf %12, %11 : vector<16x256xf32>
    %14 = math.log %13 : vector<16x256xf32>
    %15 = arith.addf %7, %14 : vector<16x256xf32>
    %16 = arith.truncf %15 : vector<16x256xf32> to vector<16x256xbf16>
    %c0_8 = arith.constant 0 : index
    %c0_9 = arith.constant 0 : index
    %17 = vector.load %arg5[%c0_8, %c0_9] : memref<256x256xbf16, #tpu.memory_space<vmem>>, vector<256x256xbf16>
    %cst_10 = arith.constant dense<0.000000e+00> : vector<16x256xf32>
    %18 = tpu.matmul %16, %17, %cst_10 {dimension_numbers = #tpu.dot_dimension_numbers<[1], [0], [0], [1], [0, 0, 1, 1], [], []>} : vector<16x256xbf16>, vector<256x256xbf16>, vector<16x256xf32> -> vector<16x256xf32>
    %c0_11 = arith.constant 0 : index
    %c0_12 = arith.constant 0 : index
    %19 = vector.load %arg6[%c0_11, %c0_12] : memref<1x256xf32, #tpu.memory_space<vmem>>, vector<1x256xf32>
    %20 = vector.broadcast %19 : vector<1x256xf32> to vector<16x256xf32>
    %21 = arith.addf %18, %20 : vector<16x256xf32>
    %cst_13 = arith.constant 0.000000e+00 : f32
    %22 = vector.broadcast %cst_13 : f32 to vector<16x256xf32>
    %23 = arith.maximumf %21, %22 : vector<16x256xf32>
    %24 = math.absf %21 : vector<16x256xf32>
    %cst_14 = arith.constant 0.000000e+00 : f32
    %25 = vector.broadcast %cst_14 : f32 to vector<16x256xf32>
    %26 = arith.subf %25, %24 : vector<16x256xf32>
    %27 = math.exp %26 : vector<16x256xf32>
    %cst_15 = arith.constant 1.000000e+00 : f32
    %28 = vector.broadcast %cst_15 : f32 to vector<16x256xf32>
    %29 = arith.addf %28, %27 : vector<16x256xf32>
    %30 = math.log %29 : vector<16x256xf32>
    %31 = arith.addf %23, %30 : vector<16x256xf32>
    %32 = arith.truncf %31 : vector<16x256xf32> to vector<16x256xbf16>
    %c0_16 = arith.constant 0 : index
    %c0_17 = arith.constant 0 : index
    %33 = vector.load %arg7[%c0_16, %c0_17] : memref<256x256xbf16, #tpu.memory_space<vmem>>, vector<256x256xbf16>
    %cst_18 = arith.constant dense<0.000000e+00> : vector<16x256xf32>
    %34 = tpu.matmul %32, %33, %cst_18 {dimension_numbers = #tpu.dot_dimension_numbers<[1], [0], [0], [1], [0, 0, 1, 1], [], []>} : vector<16x256xbf16>, vector<256x256xbf16>, vector<16x256xf32> -> vector<16x256xf32>
    %c0_19 = arith.constant 0 : index
    %c0_20 = arith.constant 0 : index
    %35 = vector.load %arg8[%c0_19, %c0_20] : memref<1x256xf32, #tpu.memory_space<vmem>>, vector<1x256xf32>
    %36 = vector.broadcast %35 : vector<1x256xf32> to vector<16x256xf32>
    %37 = arith.addf %34, %36 : vector<16x256xf32>
    %38 = vector.extract_strided_slice %37 {offsets = [0, 0], sizes = [16, 128], strides = [1, 1]} : vector<16x256xf32> to vector<16x128xf32>
    %39 = vector.extract_strided_slice %37 {offsets = [0, 128], sizes = [16, 128], strides = [1, 1]} : vector<16x256xf32> to vector<16x128xf32>
    %40 = math.exp %39 : vector<16x128xf32>
    %c0_21 = arith.constant 0 : index
    %c0_22 = arith.constant 0 : index
    %41 = vector.load %arg2[%c0_21, %c0_22] : memref<16x128xf32, #tpu.memory_space<vmem>>, vector<16x128xf32>
    %42 = arith.mulf %40, %41 : vector<16x128xf32>
    %43 = arith.addf %38, %42 : vector<16x128xf32>
    %44 = tpu.iota {dimensions = array<i32: 1>} : vector<16x128xi32>
    %c16_i32 = arith.constant 16 : i32
    %45 = vector.broadcast %c16_i32 : i32 to vector<16x128xi32>
    %46 = arith.cmpi slt, %44, %45 : vector<16x128xi32>
    %cst_23 = arith.constant 0xFF800000 : f32
    %47 = vector.broadcast %cst_23 : f32 to vector<16x128xf32>
    %48 = arith.select %46, %43, %47 : vector<16x128xi1>, vector<16x128xf32>
    %cst_24 = arith.constant dense<0xFF800000> : vector<16xf32>
    %49 = vector.multi_reduction <maximumf>, %48, %cst_24 [1] : vector<16x128xf32> to vector<16xf32>
    %50 = vector.shape_cast %49 : vector<16xf32> to vector<16x1xf32>
    %51 = vector.broadcast %50 : vector<16x1xf32> to vector<16x128xf32>
    %52 = arith.subf %43, %51 : vector<16x128xf32>
    %53 = math.exp %52 : vector<16x128xf32>
    %cst_25 = arith.constant 0.000000e+00 : f32
    %54 = vector.broadcast %cst_25 : f32 to vector<16x128xf32>
    %55 = arith.select %46, %53, %54 : vector<16x128xi1>, vector<16x128xf32>
    %cst_26 = arith.constant dense<0.000000e+00> : vector<16xf32>
    %56 = vector.multi_reduction <add>, %55, %cst_26 [1] : vector<16x128xf32> to vector<16xf32>
    %57 = vector.shape_cast %56 : vector<16xf32> to vector<16x1xf32>
    %58 = tpu.reciprocal %57 : vector<16x1xf32> -> vector<16x1xf32>
    %59 = vector.broadcast %58 : vector<16x1xf32> to vector<16x128xf32>
    %60 = arith.mulf %55, %59 : vector<16x128xf32>
    %c0_27 = arith.constant 0 : index
    %c0_28 = arith.constant 0 : index
    %61 = vector.load %arg11[%c0_27, %c0_28] : memref<16x128xf32, #tpu.memory_space<vmem>>, vector<16x128xf32>
    tpu.vector_store %arg11[%c0_27, %c0_28], %60 {strides = array<i32>} : memref<16x128xf32, #tpu.memory_space<vmem>>, vector<16x128xf32>,
    %62 = arith.truncf %60 : vector<16x128xf32> to vector<16x128xbf16>
    %c0_29 = arith.constant 0 : index
    %c0_30 = arith.constant 0 : index
    %63 = vector.load %arg9[%c0_29, %c0_30] : memref<128x256xbf16, #tpu.memory_space<vmem>>, vector<128x256xbf16>
    %cst_31 = arith.constant dense<0.000000e+00> : vector<16x256xf32>
    %64 = tpu.matmul %62, %63, %cst_31 {dimension_numbers = #tpu.dot_dimension_numbers<[1], [0], [0], [1], [0, 0, 1, 1], [], []>} : vector<16x128xbf16>, vector<128x256xbf16>, vector<16x256xf32> -> vector<16x256xf32>
    %cst_32 = arith.constant dense<0xFF800000> : vector<16xf32>
    %65 = vector.multi_reduction <maximumf>, %64, %cst_32 [1] : vector<16x256xf32> to vector<16xf32>
    %66 = vector.shape_cast %65 : vector<16xf32> to vector<16x1xf32>
    %67 = vector.broadcast %66 : vector<16x1xf32> to vector<16x256xf32>
    %68 = arith.subf %64, %67 : vector<16x256xf32>
    %69 = math.exp %68 : vector<16x256xf32>
    %cst_33 = arith.constant dense<0.000000e+00> : vector<16xf32>
    %70 = vector.multi_reduction <add>, %69, %cst_33 [1] : vector<16x256xf32> to vector<16xf32>
    %71 = vector.shape_cast %70 : vector<16xf32> to vector<16x1xf32>
    %72 = tpu.reciprocal %71 {approx = true} : vector<16x1xf32> -> vector<16x1xf32>
    %73 = vector.broadcast %72 : vector<16x1xf32> to vector<16x256xf32>
    %74 = arith.mulf %69, %73 : vector<16x256xf32>
    %75 = arith.truncf %74 : vector<16x256xf32> to vector<16x256xbf16>
    %c0_34 = arith.constant 0 : index
    %c0_35 = arith.constant 0 : index
    %76 = vector.load %arg12[%c0_34, %c0_35] : memref<16x256xbf16, #tpu.memory_space<vmem>>, vector<16x256xbf16>
    tpu.vector_store %arg12[%c0_34, %c0_35], %75 {strides = array<i32>} : memref<16x256xbf16, #tpu.memory_space<vmem>>, vector<16x256xbf16>,
    %77 = math.log %71 : vector<16x1xf32>
    %78 = vector.broadcast %77 : vector<16x1xf32> to vector<16x256xf32>
    %79 = arith.subf %68, %78 : vector<16x256xf32>
    %c0_36 = arith.constant 0 : index
    %c0_37 = arith.constant 0 : index
    %80 = vector.load %arg1[%c0_36, %c0_37] : memref<16x256xbf16, #tpu.memory_space<vmem>>, vector<16x256xbf16>
    %81 = arith.extf %80 : vector<16x256xbf16> to vector<16x256xf32>
    %82 = arith.mulf %81, %79 : vector<16x256xf32>
    %cst_38 = arith.constant dense<0.000000e+00> : vector<16xf32>
    %83 = vector.multi_reduction <add>, %82, %cst_38 [1] : vector<16x256xf32> to vector<16xf32>
    %84 = vector.shape_cast %83 : vector<16xf32> to vector<16x1xf32>
    %cst_39 = arith.constant 0.000000e+00 : f32
    %85 = vector.broadcast %cst_39 : f32 to vector<16x1xf32>
    %86 = arith.subf %85, %84 : vector<16x1xf32>
    %c0_40 = arith.constant 0 : index
    %c0_41 = arith.constant 0 : index
    %87 = vector.load %arg10[%c0_40, %c0_41] : memref<8x128xf32, #tpu.memory_space<vmem>>, vector<8x128xf32>
    %88 = vector.extract_strided_slice %87 {offsets = [0, 0], sizes = [1, 128], strides = [1, 1]} : vector<8x128xf32> to vector<1x128xf32>
    %89 = vector.extract_strided_slice %87 {offsets = [1, 0], sizes = [1, 128], strides = [1, 1]} : vector<8x128xf32> to vector<1x128xf32>
    %90 = vector.extract_strided_slice %87 {offsets = [2, 0], sizes = [1, 128], strides = [1, 1]} : vector<8x128xf32> to vector<1x128xf32>
    %91 = arith.mulf %40, %40 : vector<16x128xf32>
    %92 = vector.broadcast %89 : vector<1x128xf32> to vector<16x128xf32>
    %93 = arith.mulf %91, %92 : vector<16x128xf32>
    %94 = vector.broadcast %88 : vector<1x128xf32> to vector<16x128xf32>
    %95 = arith.subf %94, %38 : vector<16x128xf32>
    %96 = arith.mulf %95, %95 : vector<16x128xf32>
    %97 = vector.broadcast %89 : vector<1x128xf32> to vector<16x128xf32>
    %98 = arith.mulf %96, %97 : vector<16x128xf32>
    %99 = arith.addf %93, %98 : vector<16x128xf32>
    %100 = vector.broadcast %90 : vector<1x128xf32> to vector<16x128xf32>
    %101 = arith.addf %99, %100 : vector<16x128xf32>
    %cst_42 = arith.constant 2.000000e+00 : f32
    %102 = vector.broadcast %cst_42 : f32 to vector<16x128xf32>
    %103 = arith.mulf %102, %39 : vector<16x128xf32>
    %104 = arith.subf %101, %103 : vector<16x128xf32>
    %cst_43 = arith.constant dense<0.000000e+00> : vector<16xf32>
    %105 = vector.multi_reduction <add>, %104, %cst_43 [1] : vector<16x128xf32> to vector<16xf32>
    %106 = vector.shape_cast %105 : vector<16xf32> to vector<16x1xf32>
    %cst_44 = arith.constant 1.600000e+01 : f32
    %107 = vector.broadcast %cst_44 : f32 to vector<16x1xf32>
    %108 = arith.subf %106, %107 : vector<16x1xf32>
    %cst_45 = arith.constant 5.000000e-01 : f32
    %109 = vector.broadcast %cst_45 : f32 to vector<16x1xf32>
    %110 = arith.mulf %109, %108 : vector<16x1xf32>
    %111 = tpu.iota {dimensions = array<i32: 1>} : vector<16x128xi32>
    %c0_i32 = arith.constant 0 : i32
    %112 = vector.broadcast %c0_i32 : i32 to vector<16x128xi32>
    %113 = arith.cmpi eq, %111, %112 : vector<16x128xi32>
    %c1_i32 = arith.constant 1 : i32
    %114 = vector.broadcast %c1_i32 : i32 to vector<16x128xi32>
    %115 = arith.cmpi eq, %111, %114 : vector<16x128xi32>
    %c2_i32 = arith.constant 2 : i32
    %116 = vector.broadcast %c2_i32 : i32 to vector<16x128xi32>
    %117 = arith.cmpi eq, %111, %116 : vector<16x128xi32>
    %cst_46 = arith.constant 1.000000e+00 : f32
    %118 = vector.broadcast %cst_46 : f32 to vector<16x1xf32>
    %119 = arith.mulf %118, %110 : vector<16x1xf32>
    %120 = arith.addf %86, %119 : vector<16x1xf32>
    %cst_47 = arith.constant 0.000000e+00 : f32
    %121 = vector.shape_cast %120 : vector<16x1xf32> to vector<16x1xf32>
    %122 = vector.broadcast %121 : vector<16x1xf32> to vector<16x128xf32>
    %123 = vector.broadcast %cst_47 : f32 to vector<16x128xf32>
    %124 = arith.select %117, %122, %123 : vector<16x128xi1>, vector<16x128xf32>
    %125 = vector.shape_cast %110 : vector<16x1xf32> to vector<16x1xf32>
    %126 = vector.broadcast %125 : vector<16x1xf32> to vector<16x128xf32>
    %127 = arith.select %115, %126, %124 : vector<16x128xi1>, vector<16x128xf32>
    %128 = vector.shape_cast %86 : vector<16x1xf32> to vector<16x1xf32>
    %129 = vector.broadcast %128 : vector<16x1xf32> to vector<16x128xf32>
    %130 = arith.select %113, %129, %127 : vector<16x128xi1>, vector<16x128xf32>
    %c0_48 = arith.constant 0 : index
    %c0_49 = arith.constant 0 : index
    %131 = vector.load %arg13[%c0_48, %c0_49] : memref<16x128xf32, #tpu.memory_space<vmem>>, vector<16x128xf32>
    tpu.vector_store %arg13[%c0_48, %c0_49], %130 {strides = array<i32>} : memref<16x128xf32, #tpu.memory_space<vmem>>, vector<16x128xf32>,
    return
  }
  func.func @transform_0(%arg0: i32) -> (i32, i32) {
    %c0_i32 = arith.constant 0 : i32
    %c0_i32_0 = arith.constant 0 : i32
    return %arg0, %c0_i32 : i32, i32
  }
  func.func @transform_1(%arg0: i32) -> (i32, i32) {
    %c0_i32 = arith.constant 0 : i32
    %c0_i32_0 = arith.constant 0 : i32
    return %arg0, %c0_i32 : i32, i32
  }
  func.func @transform_2(%arg0: i32) -> (i32, i32) {
    %c0_i32 = arith.constant 0 : i32
    %c0_i32_0 = arith.constant 0 : i32
    %c0_i32_1 = arith.constant 0 : i32
    return %c0_i32, %c0_i32_0 : i32, i32
  }
  func.func @transform_3(%arg0: i32) -> (i32, i32) {
    %c0_i32 = arith.constant 0 : i32
    %c0_i32_0 = arith.constant 0 : i32
    %c0_i32_1 = arith.constant 0 : i32
    return %c0_i32, %c0_i32_0 : i32, i32
  }
  func.func @transform_4(%arg0: i32) -> (i32, i32) {
    %c0_i32 = arith.constant 0 : i32
    %c0_i32_0 = arith.constant 0 : i32
    %c0_i32_1 = arith.constant 0 : i32
    return %c0_i32, %c0_i32_0 : i32, i32
  }
  func.func @transform_5(%arg0: i32) -> (i32, i32) {
    %c0_i32 = arith.constant 0 : i32
    %c0_i32_0 = arith.constant 0 : i32
    %c0_i32_1 = arith.constant 0 : i32
    return %c0_i32, %c0_i32_0 : i32, i32
  }
  func.func @transform_6(%arg0: i32) -> (i32, i32) {
    %c0_i32 = arith.constant 0 : i32
    %c0_i32_0 = arith.constant 0 : i32
    %c0_i32_1 = arith.constant 0 : i32
    return %c0_i32, %c0_i32_0 : i32, i32
  }
  func.func @transform_7(%arg0: i32) -> (i32, i32) {
    %c0_i32 = arith.constant 0 : i32
    %c0_i32_0 = arith.constant 0 : i32
    %c0_i32_1 = arith.constant 0 : i32
    return %c0_i32, %c0_i32_0 : i32, i32
  }
  func.func @transform_8(%arg0: i32) -> (i32, i32) {
    %c0_i32 = arith.constant 0 : i32
    %c0_i32_0 = arith.constant 0 : i32
    %c0_i32_1 = arith.constant 0 : i32
    return %c0_i32, %c0_i32_0 : i32, i32
  }
  func.func @transform_9(%arg0: i32) -> (i32, i32) {
    %c0_i32 = arith.constant 0 : i32
    %c0_i32_0 = arith.constant 0 : i32
    %c0_i32_1 = arith.constant 0 : i32
    return %c0_i32, %c0_i32_0 : i32, i32
  }
  func.func @transform_10(%arg0: i32) -> (i32, i32) {
    %c0_i32 = arith.constant 0 : i32
    %c0_i32_0 = arith.constant 0 : i32
    return %arg0, %c0_i32 : i32, i32
  }
  func.func @transform_11(%arg0: i32) -> (i32, i32) {
    %c0_i32 = arith.constant 0 : i32
    %c0_i32_0 = arith.constant 0 : i32
    return %arg0, %c0_i32 : i32, i32
  }
  func.func @transform_12(%arg0: i32) -> (i32, i32) {
    %c0_i32 = arith.constant 0 : i32
    %c0_i32_0 = arith.constant 0 : i32
    return %arg0, %c0_i32 : i32, i32
  }
}

</mosaic_0001>

<llo_original>
// kernel: tpu_custom_call.1
$region0: #{tpu_custom_call.1}
  #allocation0 [shape = 'u32[]', space=smem, size = 0x4, offset = 0x4, fixed_abs, tag = 'smem constant byte address 0x4 - core index']
  #allocation1 [shape = 'u32[144,128]{1,0:T(1,128)}', space=vmem, size = 0x12000, scoped, tag = 'internal scratch']
  %s0 = inlined_call_operand.hbm [shape: bf16[32,256], index: 0, kind: input, shape index: {}]
  %s1 = inlined_call_operand.hbm [shape: f32[32,128], index: 1, kind: input, shape index: {}]
  %s2 = inlined_call_operand.hbm [shape: bf16[256,256], index: 2, kind: input, shape index: {}]
  %s3 = inlined_call_operand.vmem [shape: f32[1,256], index: 3, kind: input, shape index: {}]
  %s4 = inlined_call_operand.hbm [shape: bf16[256,256], index: 4, kind: input, shape index: {}]
  %s5 = inlined_call_operand.vmem [shape: f32[1,256], index: 5, kind: input, shape index: {}]
  %s6 = inlined_call_operand.hbm [shape: bf16[256,256], index: 6, kind: input, shape index: {}]
  %s7 = inlined_call_operand.vmem [shape: f32[1,256], index: 7, kind: input, shape index: {}]
  %s8 = inlined_call_operand.hbm [shape: bf16[128,256], index: 8, kind: input, shape index: {}]
  %s9 = inlined_call_operand.vmem [shape: f32[8,128], index: 9, kind: input, shape index: {}]
  %s10 = inlined_call_operand.hbm [shape: f32[32,128], index: 10, kind: output, shape index: {0}]
  %s11 = inlined_call_operand.hbm [shape: bf16[32,256], index: 11, kind: output, shape index: {1}]
  %s12 = inlined_call_operand.hbm [shape: f32[32,128], index: 12, kind: output, shape index: {2}]
  %13 = xla_tuple %s10, %s11, %s12
  %s14 = sld [smem:[#allocation0]]
  $region113: #{tpu_custom_call.1} parent=0
    _
  %s16 = ssub.s32 1, %s14
  %s17 = scalar_select 0, %s16, %s14
  $region1: #{tpu_custom_call.1} parent=0
    #allocation2 [shape = 'u8[16384]{0}', space=vmem, size = 0x4000, scoped, tag = 'input window, operand 0']
    #allocation3 [shape = 's32[2]{0}', space=sflag, size = 0x8, scoped, tag = 'scoped memory for tpu_custom_call.1']
    #allocation4 [shape = 's32[2]{0}', space=sflag, size = 0x8, scoped, tag = 'scoped memory for tpu_custom_call.1']
    #allocation5 [shape = 'u8[16384]{0}', space=vmem, size = 0x4000, scoped, tag = 'input window, operand 1']
    #allocation6 [shape = 's32[2]{0}', space=sflag, size = 0x8, scoped, tag = 'scoped memory for tpu_custom_call.1']
    #allocation7 [shape = 'u8[131072]{0}', space=vmem, size = 0x20000, scoped, tag = 'input window, operand 2, single buffered']
    #allocation8 [shape = 'u8[131072]{0}', space=vmem, size = 0x20000, scoped, tag = 'input window, operand 4, single buffered']
    #allocation9 [shape = 's32[1]{0}', space=sflag, size = 0x4, scoped, tag = 'scoped memory for tpu_custom_call.1']
    #allocation10 [shape = 'u8[131072]{0}', space=vmem, size = 0x20000, scoped, tag = 'input window, operand 6, single buffered']
    #allocation11 [shape = 'u8[65536]{0}', space=vmem, size = 0x10000, scoped, tag = 'input window, operand 8, single buffered']
    #allocation12 [shape = 's32[1]{0}', space=sflag, size = 0x4, scoped, tag = 'scoped memory for tpu_custom_call.1']
    #allocation13 [shape = 'u8[16384]{0}', space=vmem, size = 0x4000, scoped, tag = 'output window, operand 0']
    #allocation14 [shape = 'u8[16384]{0}', space=vmem, size = 0x4000, scoped, tag = 'output window, operand 1']
    #allocation15 [shape = 's32[2]{0}', space=sflag, size = 0x8, scoped, tag = 'scoped memory for tpu_custom_call.1']
    #allocation16 [shape = 'u8[16384]{0}', space=vmem, size = 0x4000, scoped, tag = 'output window, operand 2']
    %18 = vsyncpa [#allocation3], 0
    %s19 = scalar_lea.sflag [#allocation3], 1
    %20 = vsyncpa %s19, 0
    %21 = vsyncpa [#allocation6], 0
    %s22 = scalar_lea.sflag [#allocation6], 1
    %23 = vsyncpa %s22, 0
    %24 = vsyncpa [#allocation9], 0
    %25 = vsyncpa [#allocation12], 0
    %26 = vsyncpa [#allocation4], 0
    %s27 = scalar_lea.sflag [#allocation4], 1
    %28 = vsyncpa %s27, 0
    %29 = vsyncpa [#allocation15], 0
    %s30 = scalar_lea.sflag [#allocation15], 1
    %31 = vsyncpa %s30, 0
    loop: start=0, step=1, limit=4
    $region2: #{tpu_custom_call.1} parent=1 // loop_pre_header
      _
    $region3: #{tpu_custom_call.1} parent=1 // loop_header
      %s33 = sphi 0, %s37
      %p34 = scmp.ge.s32.totalorder %s33, 4
      %s43 = sphi 0, %s45
      %s46 = sphi 0, %s43
      %s47 = sphi 0, %s46
      %s63 = sphi 0, %s47
      %s69 = sphi 0, %s71
      %s72 = sphi 0, %s69
      %s73 = sphi 0, %s72
      %s89 = sphi 0, %s73
      %s93 = sphi 0, %s93
      %s95 = sphi 0, %s93
      %s96 = sphi 0, %s95
      %s110 = sphi 0, %s96
      %s114 = sphi 0, %s114
      %s116 = sphi 0, %s114
      %s117 = sphi 0, %s116
      %s131 = sphi 0, %s117
      %s135 = sphi 0, %s135
      %s137 = sphi 0, %s135
      %s138 = sphi 0, %s137
      %s152 = sphi 0, %s138
      %s156 = sphi 0, %s156
      %s158 = sphi 0, %s156
      %s159 = sphi 0, %s158
      %s173 = sphi 0, %s159
      %s177 = sphi 0, %s177
      %s179 = sphi 0, %s177
      %s180 = sphi 0, %s179
      %s194 = sphi 0, %s180
      %s198 = sphi 0, %s198
      %s200 = sphi 0, %s198
      %s201 = sphi 0, %s200
      %s215 = sphi 0, %s201
      %s219 = sphi 0, %s219
      %s221 = sphi 0, %s219
      %s222 = sphi 0, %s221
      %s236 = sphi 0, %s222
      %s240 = sphi 0, %s240
      %s242 = sphi 0, %s240
      %s243 = sphi 0, %s242
      %s257 = sphi 0, %s243
      %s263 = sphi 0, %s265
      %s266 = sphi 0, %s263
      %s267 = sphi 0, %s266
      %s283 = sphi 0, %s267
      %s289 = sphi 0, %s291
      %s292 = sphi 0, %s289
      %s293 = sphi 0, %s292
      %s309 = sphi 0, %s293
      %s315 = sphi 0, %s317
      %s318 = sphi 0, %s315
      %s319 = sphi 0, %s318
      %s335 = sphi 0, %s319
    $region4: #{tpu_custom_call.1} parent=1 // loop_header_branch
      %36 = sbr.rel (%p34) target = $region8
    $region5: #{tpu_custom_call.1} parent=1 // loop_body
      %s38 = ssub.s32 %s33, 1
      %s39 = ssub.s32 %s33, 2
      %s40 = sadd.s32 %s33, 1
      %s41 = ssub.s32 %s33, %s40
      %p42 = scmp.eq.s32.totalorder %s41, 0
      %s44 = sadd.s32 %s43, 1
      %s45 = scalar_select %p42, %s43, %s44
      %p48 = pneg %p42
      %p49 = scmp.eq.s32.totalorder %s33, 1
      %p50 = por %p48, %p49
      %p51 = scmp.ne.s32.totalorder %s43, %s46
      %p52 = scmp.eq.s32.totalorder %s33, 0
      %p53 = por %p51, %p52
      %p54 = scmp.ne.s32.totalorder %s43, %s46
      %p55 = scmp.eq.s32.totalorder %s38, 1
      %p56 = por %p54, %p55
      %p57 = scmp.ne.s32.totalorder %s46, %s47
      %p58 = scmp.eq.s32.totalorder %s38, 0
      %p59 = por %p57, %p58
      %p60 = scmp.ne.s32.totalorder %s46, %s47
      %p61 = scmp.eq.s32.totalorder %s39, 1
      %p62 = por %p60, %p61
      %p64 = scmp.ne.s32.totalorder %s47, %s63
      %p65 = scmp.eq.s32.totalorder %s39, 0
      %p66 = por %p64, %p65
      %s67 = ssub.s32 %s33, %s40
      %p68 = scmp.eq.s32.totalorder %s67, 0
      %s70 = sadd.s32 %s69, 1
      %s71 = scalar_select %p68, %s69, %s70
      %p74 = pneg %p68
      %p75 = scmp.eq.s32.totalorder %s33, 1
      %p76 = por %p74, %p75
      %p77 = scmp.ne.s32.totalorder %s69, %s72
      %p78 = scmp.eq.s32.totalorder %s33, 0
      %p79 = por %p77, %p78
      %p80 = scmp.ne.s32.totalorder %s69, %s72
      %p81 = scmp.eq.s32.totalorder %s38, 1
      %p82 = por %p80, %p81
      %p83 = scmp.ne.s32.totalorder %s72, %s73
      %p84 = scmp.eq.s32.totalorder %s38, 0
      %p85 = por %p83, %p84
      %p86 = scmp.ne.s32.totalorder %s72, %s73
      %p87 = scmp.eq.s32.totalorder %s39, 1
      %p88 = por %p86, %p87
      %p90 = scmp.ne.s32.totalorder %s73, %s89
      %p91 = scmp.eq.s32.totalorder %s39, 0
      %p92 = por %p90, %p91
      %s94 = sadd.s32 %s93, 1
      %p97 = scmp.eq.s32.totalorder %s33, 1
      %p98 = scmp.ne.s32.totalorder %s93, %s95
      %p99 = scmp.eq.s32.totalorder %s33, 0
      %p100 = por %p98, %p99
      %p101 = scmp.ne.s32.totalorder %s93, %s95
      %p102 = scmp.eq.s32.totalorder %s38, 1
      %p103 = por %p101, %p102
      %p104 = scmp.ne.s32.totalorder %s95, %s96
      %p105 = scmp.eq.s32.totalorder %s38, 0
      %p106 = por %p104, %p105
      %p107 = scmp.ne.s32.totalorder %s95, %s96
      %p108 = scmp.eq.s32.totalorder %s39, 1
      %p109 = por %p107, %p108
      %p111 = scmp.ne.s32.totalorder %s96, %s110
      %p112 = scmp.eq.s32.totalorder %s39, 0
      %p113 = por %p111, %p112
      %s115 = sadd.s32 %s114, 1
      %p118 = scmp.eq.s32.totalorder %s33, 1
      %p119 = scmp.ne.s32.totalorder %s114, %s116
      %p120 = scmp.eq.s32.totalorder %s33, 0
      %p121 = por %p119, %p120
      %p122 = scmp.ne.s32.totalorder %s114, %s116
      %p123 = scmp.eq.s32.totalorder %s38, 1
      %p124 = por %p122, %p123
      %p125 = scmp.ne.s32.totalorder %s116, %s117
      %p126 = scmp.eq.s32.totalorder %s38, 0
      %p127 = por %p125, %p126
      %p128 = scmp.ne.s32.totalorder %s116, %s117
      %p129 = scmp.eq.s32.totalorder %s39, 1
      %p130 = por %p128, %p129
      %p132 = scmp.ne.s32.totalorder %s117, %s131
      %p133 = scmp.eq.s32.totalorder %s39, 0
      %p134 = por %p132, %p133
      %s136 = sadd.s32 %s135, 1
      %p139 = scmp.eq.s32.totalorder %s33, 1
      %p140 = scmp.ne.s32.totalorder %s135, %s137
      %p141 = scmp.eq.s32.totalorder %s33, 0
      %p142 = por %p140, %p141
      %p143 = scmp.ne.s32.totalorder %s135, %s137
      %p144 = scmp.eq.s32.totalorder %s38, 1
      %p145 = por %p143, %p144
      %p146 = scmp.ne.s32.totalorder %s137, %s138
      %p147 = scmp.eq.s32.totalorder %s38, 0
      %p148 = por %p146, %p147
      %p149 = scmp.ne.s32.totalorder %s137, %s138
      %p150 = scmp.eq.s32.totalorder %s39, 1
      %p151 = por %p149, %p150
      %p153 = scmp.ne.s32.totalorder %s138, %s152
      %p154 = scmp.eq.s32.totalorder %s39, 0
      %p155 = por %p153, %p154
      %s157 = sadd.s32 %s156, 1
      %p160 = scmp.eq.s32.totalorder %s33, 1
      %p161 = scmp.ne.s32.totalorder %s156, %s158
      %p162 = scmp.eq.s32.totalorder %s33, 0
      %p163 = por %p161, %p162
      %p164 = scmp.ne.s32.totalorder %s156, %s158
      %p165 = scmp.eq.s32.totalorder %s38, 1
      %p166 = por %p164, %p165
      %p167 = scmp.ne.s32.totalorder %s158, %s159
      %p168 = scmp.eq.s32.totalorder %s38, 0
      %p169 = por %p167, %p168
      %p170 = scmp.ne.s32.totalorder %s158, %s159
      %p171 = scmp.eq.s32.totalorder %s39, 1
      %p172 = por %p170, %p171
      %p174 = scmp.ne.s32.totalorder %s159, %s173
      %p175 = scmp.eq.s32.totalorder %s39, 0
      %p176 = por %p174, %p175
      %s178 = sadd.s32 %s177, 1
      %p181 = scmp.eq.s32.totalorder %s33, 1
      %p182 = scmp.ne.s32.totalorder %s177, %s179
      %p183 = scmp.eq.s32.totalorder %s33, 0
      %p184 = por %p182, %p183
      %p185 = scmp.ne.s32.totalorder %s177, %s179
      %p186 = scmp.eq.s32.totalorder %s38, 1
      %p187 = por %p185, %p186
      %p188 = scmp.ne.s32.totalorder %s179, %s180
      %p189 = scmp.eq.s32.totalorder %s38, 0
      %p190 = por %p188, %p189
      %p191 = scmp.ne.s32.totalorder %s179, %s180
      %p192 = scmp.eq.s32.totalorder %s39, 1
      %p193 = por %p191, %p192
      %p195 = scmp.ne.s32.totalorder %s180, %s194
      %p196 = scmp.eq.s32.totalorder %s39, 0
      %p197 = por %p195, %p196
      %s199 = sadd.s32 %s198, 1
      %p202 = scmp.eq.s32.totalorder %s33, 1
      %p203 = scmp.ne.s32.totalorder %s198, %s200
      %p204 = scmp.eq.s32.totalorder %s33, 0
      %p205 = por %p203, %p204
      %p206 = scmp.ne.s32.totalorder %s198, %s200
      %p207 = scmp.eq.s32.totalorder %s38, 1
      %p208 = por %p206, %p207
      %p209 = scmp.ne.s32.totalorder %s200, %s201
      %p210 = scmp.eq.s32.totalorder %s38, 0
      %p211 = por %p209, %p210
      %p212 = scmp.ne.s32.totalorder %s200, %s201
      %p213 = scmp.eq.s32.totalorder %s39, 1
      %p214 = por %p212, %p213
      %p216 = scmp.ne.s32.totalorder %s201, %s215
      %p217 = scmp.eq.s32.totalorder %s39, 0
      %p218 = por %p216, %p217
      %s220 = sadd.s32 %s219, 1
      %p223 = scmp.eq.s32.totalorder %s33, 1
      %p224 = scmp.ne.s32.totalorder %s219, %s221
      %p225 = scmp.eq.s32.totalorder %s33, 0
      %p226 = por %p224, %p225
      %p227 = scmp.ne.s32.totalorder %s219, %s221
      %p228 = scmp.eq.s32.totalorder %s38, 1
      %p229 = por %p227, %p228
      %p230 = scmp.ne.s32.totalorder %s221, %s222
      %p231 = scmp.eq.s32.totalorder %s38, 0
      %p232 = por %p230, %p231
      %p233 = scmp.ne.s32.totalorder %s221, %s222
      %p234 = scmp.eq.s32.totalorder %s39, 1
      %p235 = por %p233, %p234
      %p237 = scmp.ne.s32.totalorder %s222, %s236
      %p238 = scmp.eq.s32.totalorder %s39, 0
      %p239 = por %p237, %p238
      %s241 = sadd.s32 %s240, 1
      %p244 = scmp.eq.s32.totalorder %s33, 1
      %p245 = scmp.ne.s32.totalorder %s240, %s242
      %p246 = scmp.eq.s32.totalorder %s33, 0
      %p247 = por %p245, %p246
      %p248 = scmp.ne.s32.totalorder %s240, %s242
      %p249 = scmp.eq.s32.totalorder %s38, 1
      %p250 = por %p248, %p249
      %p251 = scmp.ne.s32.totalorder %s242, %s243
      %p252 = scmp.eq.s32.totalorder %s38, 0
      %p253 = por %p251, %p252
      %p254 = scmp.ne.s32.totalorder %s242, %s243
      %p255 = scmp.eq.s32.totalorder %s39, 1
      %p256 = por %p254, %p255
      %p258 = scmp.ne.s32.totalorder %s243, %s257
      %p259 = scmp.eq.s32.totalorder %s39, 0
      %p260 = por %p258, %p259
      %s261 = ssub.s32 %s33, %s40
      %p262 = scmp.eq.s32.totalorder %s261, 0
      %s264 = sadd.s32 %s263, 1
      %s265 = scalar_select %p262, %s263, %s264
      %p268 = pneg %p262
      %p269 = scmp.eq.s32.totalorder %s33, 1
      %p270 = por %p268, %p269
      %p271 = scmp.ne.s32.totalorder %s263, %s266
      %p272 = scmp.eq.s32.totalorder %s33, 0
      %p273 = por %p271, %p272
      %p274 = scmp.ne.s32.totalorder %s263, %s266
      %p275 = scmp.eq.s32.totalorder %s38, 1
      %p276 = por %p274, %p275
      %p277 = scmp.ne.s32.totalorder %s266, %s267
      %p278 = scmp.eq.s32.totalorder %s38, 0
      %p279 = por %p277, %p278
      %p280 = scmp.ne.s32.totalorder %s266, %s267
      %p281 = scmp.eq.s32.totalorder %s39, 1
      %p282 = por %p280, %p281
      %p284 = scmp.ne.s32.totalorder %s267, %s283
      %p285 = scmp.eq.s32.totalorder %s39, 0
      %p286 = por %p284, %p285
      %s287 = ssub.s32 %s33, %s40
      %p288 = scmp.eq.s32.totalorder %s287, 0
      %s290 = sadd.s32 %s289, 1
      %s291 = scalar_select %p288, %s289, %s290
      %p294 = pneg %p288
      %p295 = scmp.eq.s32.totalorder %s33, 1
      %p296 = por %p294, %p295
      %p297 = scmp.ne.s32.totalorder %s289, %s292
      %p298 = scmp.eq.s32.totalorder %s33, 0
      %p299 = por %p297, %p298
      %p300 = scmp.ne.s32.totalorder %s289, %s292
      %p301 = scmp.eq.s32.totalorder %s38, 1
      %p302 = por %p300, %p301
      %p303 = scmp.ne.s32.totalorder %s292, %s293
      %p304 = scmp.eq.s32.totalorder %s38, 0
      %p305 = por %p303, %p304
      %p306 = scmp.ne.s32.totalorder %s292, %s293
      %p307 = scmp.eq.s32.totalorder %s39, 1
      %p308 = por %p306, %p307
      %p310 = scmp.ne.s32.totalorder %s293, %s309
      %p311 = scmp.eq.s32.totalorder %s39, 0
      %p312 = por %p310, %p311
      %s313 = ssub.s32 %s33, %s40
      %p314 = scmp.eq.s32.totalorder %s313, 0
      %s316 = sadd.s32 %s315, 1
      %s317 = scalar_select %p314, %s315, %s316
      %p320 = pneg %p314
      %p321 = scmp.eq.s32.totalorder %s33, 1
      %p322 = por %p320, %p321
      %p323 = scmp.ne.s32.totalorder %s315, %s318
      %p324 = scmp.eq.s32.totalorder %s33, 0
      %p325 = por %p323, %p324
      %p326 = scmp.ne.s32.totalorder %s315, %s318
      %p327 = scmp.eq.s32.totalorder %s38, 1
      %p328 = por %p326, %p327
      %p329 = scmp.ne.s32.totalorder %s318, %s319
      %p330 = scmp.eq.s32.totalorder %s38, 0
      %p331 = por %p329, %p330
      %p332 = scmp.ne.s32.totalorder %s318, %s319
      %p333 = scmp.eq.s32.totalorder %s39, 1
      %p334 = por %p332, %p333
      %p336 = scmp.ne.s32.totalorder %s319, %s335
      %p337 = scmp.eq.s32.totalorder %s39, 0
      %p338 = por %p336, %p337
      %p339 = scmp.le.s32.totalorder 1, %s33
      %p340 = scmp.lt.s32.totalorder %s33, 3
      %p341 = pnand %p339, %p340
      %p342 = pneg %p341
      // Predicated region
      $region9: #{tpu_custom_call.1} parent=5 // pred_check
        _
      $region10: #{tpu_custom_call.1} parent=5 // pred_check_branch
        %344 = sbr.rel (%p341) target = $region12
      $region11: #{tpu_custom_call.1} parent=5 // pred_region
        %s345 = ssub.s32 %s33, 1
        // Predicated region
        $region13: #{tpu_custom_call.1} parent=11 // pred_check
          %p346 = pneg %p106
        $region14: #{tpu_custom_call.1} parent=11 // pred_check_branch
          %348 = sbr.rel (%p346) target = $region16
        $region15: #{tpu_custom_call.1} parent=11 // pred_region
          %s350 = ssub.s32 4096, 4096
          %351 = vsyncadd [#allocation6], %s350
          %s352 = sshll.u32 [#allocation7], 4
          %s353 = int_to_ptr.vmem [resolvable:$true] %s352
          %358 = dma.hbm_to_vmem [thread:$0]  %s2, 4096, %s353, [#allocation6], 128, 128, 8
        $region16: #{tpu_custom_call.1} parent=11 // pred_fallthru
          _
        // Predicated region
        $region17: #{tpu_custom_call.1} parent=11 // pred_check
          %p359 = pneg %p127
        $region18: #{tpu_custom_call.1} parent=11 // pred_check_branch
          %361 = sbr.rel (%p359) target = $region20
        $region19: #{tpu_custom_call.1} parent=11 // pred_region
          _
        $region20: #{tpu_custom_call.1} parent=11 // pred_fallthru
          _
        // Predicated region
        $region21: #{tpu_custom_call.1} parent=11 // pred_check
          %p362 = pneg %p148
        $region22: #{tpu_custom_call.1} parent=11 // pred_check_branch
          %364 = sbr.rel (%p362) target = $region24
        $region23: #{tpu_custom_call.1} parent=11 // pred_region
          %s366 = ssub.s32 4096, 4096
          %367 = vsyncadd [#allocation9], %s366
          %s368 = sshll.u32 [#allocation8], 4
          %s369 = int_to_ptr.vmem [resolvable:$true] %s368
          %374 = dma.hbm_to_vmem [thread:$0]  %s4, 4096, %s369, [#allocation9], 128, 128, 8
        $region24: #{tpu_custom_call.1} parent=11 // pred_fallthru
          _
        // Predicated region
        $region25: #{tpu_custom_call.1} parent=11 // pred_check
          %p375 = pneg %p169
        $region26: #{tpu_custom_call.1} parent=11 // pred_check_branch
          %377 = sbr.rel (%p375) target = $region28
        $region27: #{tpu_custom_call.1} parent=11 // pred_region
          _
        $region28: #{tpu_custom_call.1} parent=11 // pred_fallthru
          _
        // Predicated region
        $region29: #{tpu_custom_call.1} parent=11 // pred_check
          %p378 = pneg %p190
        $region30: #{tpu_custom_call.1} parent=11 // pred_check_branch
          %380 = sbr.rel (%p378) target = $region32
        $region31: #{tpu_custom_call.1} parent=11 // pred_region
          %s382 = ssub.s32 4096, 4096
          %383 = vsyncadd [#allocation9], %s382
          %s384 = sshll.u32 [#allocation10], 4
          %s385 = int_to_ptr.vmem [resolvable:$true] %s384
          %390 = dma.hbm_to_vmem [thread:$0]  %s6, 4096, %s385, [#allocation9], 128, 128, 8
        $region32: #{tpu_custom_call.1} parent=11 // pred_fallthru
          _
        // Predicated region
        $region33: #{tpu_custom_call.1} parent=11 // pred_check
          %p391 = pneg %p211
        $region34: #{tpu_custom_call.1} parent=11 // pred_check_branch
          %393 = sbr.rel (%p391) target = $region36
        $region35: #{tpu_custom_call.1} parent=11 // pred_region
          _
        $region36: #{tpu_custom_call.1} parent=11 // pred_fallthru
          _
        // Predicated region
        $region37: #{tpu_custom_call.1} parent=11 // pred_check
          %p394 = pneg %p232
        $region38: #{tpu_custom_call.1} parent=11 // pred_check_branch
          %396 = sbr.rel (%p394) target = $region40
        $region39: #{tpu_custom_call.1} parent=11 // pred_region
          %s398 = ssub.s32 2048, 2048
          %399 = vsyncadd [#allocation12], %s398
          %s400 = sshll.u32 [#allocation11], 4
          %s401 = int_to_ptr.vmem [resolvable:$true] %s400
          %406 = dma.hbm_to_vmem [thread:$0]  %s8, 2048, %s401, [#allocation12], 128, 128, 8
        $region40: #{tpu_custom_call.1} parent=11 // pred_fallthru
          _
        // Predicated region
        $region41: #{tpu_custom_call.1} parent=11 // pred_check
          %p407 = pneg %p253
        $region42: #{tpu_custom_call.1} parent=11 // pred_check_branch
          %409 = sbr.rel (%p407) target = $region44
        $region43: #{tpu_custom_call.1} parent=11 // pred_region
          _
        $region44: #{tpu_custom_call.1} parent=11 // pred_fallthru
          _
      $region12: #{tpu_custom_call.1} parent=5 // pred_fallthru
        _
      %p410 = scmp.lt.s32.totalorder %s33, 2
      // Predicated region
      $region45: #{tpu_custom_call.1} parent=5 // pred_check
        %p411 = pneg %p410
      $region46: #{tpu_custom_call.1} parent=5 // pred_check_branch
        %413 = sbr.rel (%p411) target = $region48
      $region47: #{tpu_custom_call.1} parent=5 // pred_region
        // Predicated region
        $region49: #{tpu_custom_call.1} parent=47 // pred_check
          %p414 = pneg %p53
        $region50: #{tpu_custom_call.1} parent=47 // pred_check_branch
          %416 = sbr.rel (%p414) target = $region52
        $region51: #{tpu_custom_call.1} parent=47 // pred_region
          %s417 = sand.u32 %s43, 1
          %s418 = scalar_lea.sflag [#allocation3], %s417
          %s419 = sand.u32 %s43, 1
          %s420 = smul.addr %s419, 16
          %s421 = scalar_lea.vmem [#allocation2], %s420
          %s422 = smul.u32 2, %s33
          %s424 = ssub.s32 256, 256
          %425 = vsyncadd %s418, %s424
          %s426 = smul.addr %s422, 2
          %s427 = smul.addr %s426, 64
          %s428 = scalar_lea.hbm %s0, %s427
          %s429 = sshll.u32 %s421, 4
          %s430 = int_to_ptr.vmem [resolvable:$true] %s429
          %435 = dma.hbm_to_vmem [thread:$0]  %s428, 256, %s430, %s418, 128, 128, 8
        $region52: #{tpu_custom_call.1} parent=47 // pred_fallthru
          _
        // Predicated region
        $region53: #{tpu_custom_call.1} parent=47 // pred_check
          %p436 = pneg %p79
        $region54: #{tpu_custom_call.1} parent=47 // pred_check_branch
          %438 = sbr.rel (%p436) target = $region56
        $region55: #{tpu_custom_call.1} parent=47 // pred_region
          %s439 = sand.u32 %s33, 1
          %s440 = scalar_lea.sflag [#allocation6], %s439
          %s441 = sand.u32 %s69, 1
          %s442 = smul.addr %s441, 16
          %s443 = scalar_lea.vmem [#allocation5], %s442
          %s444 = smul.u32 2, %s33
          %s446 = ssub.s32 256, 256
          %447 = vsyncadd %s440, %s446
          %s448 = smul.addr %s444, 128
          %s449 = scalar_lea.hbm %s1, %s448
          %s450 = sshll.u32 %s443, 4
          %s451 = int_to_ptr.vmem [resolvable:$true] %s450
          %456 = dma.hbm_to_vmem [thread:$0]  %s449, 256, %s451, %s440, 128, 128, 8
        $region56: #{tpu_custom_call.1} parent=47 // pred_fallthru
          _
      $region48: #{tpu_custom_call.1} parent=5 // pred_fallthru
        _
      %p457 = scmp.le.s32.totalorder 1, %s33
      %p458 = scmp.lt.s32.totalorder %s33, 3
      %p459 = pnand %p457, %p458
      %p460 = pneg %p459
      // Predicated region
      $region57: #{tpu_custom_call.1} parent=5 // pred_check
        _
      $region58: #{tpu_custom_call.1} parent=5 // pred_check_branch
        %462 = sbr.rel (%p459) target = $region60
      $region59: #{tpu_custom_call.1} parent=5 // pred_region
        %s463 = ssub.s32 %s33, 1
        %s464 = sand.u32 %s46, 1
        %s465 = scalar_lea.sflag [#allocation3], %s464
        %s466 = sand.u32 %s46, 1
        %s467 = smul.addr %s466, 16
        %s468 = scalar_lea.vmem [#allocation2], %s467
        // Predicated region
        $region61: #{tpu_custom_call.1} parent=59 // pred_check
          %p469 = pneg %p59
        $region62: #{tpu_custom_call.1} parent=59 // pred_check_branch
          %471 = sbr.rel (%p469) target = $region64
        $region63: #{tpu_custom_call.1} parent=59 // pred_region
          %472 = dma.done %s465, 256
        $region64: #{tpu_custom_call.1} parent=59 // pred_fallthru
          _
        %s473 = sand.u32 %s38, 1
        %s474 = scalar_lea.sflag [#allocation6], %s473
        %s475 = sand.u32 %s72, 1
        %s476 = smul.addr %s475, 16
        %s477 = scalar_lea.vmem [#allocation5], %s476
        // Predicated region
        $region65: #{tpu_custom_call.1} parent=59 // pred_check
          %p478 = pneg %p85
        $region66: #{tpu_custom_call.1} parent=59 // pred_check_branch
          %480 = sbr.rel (%p478) target = $region68
        $region67: #{tpu_custom_call.1} parent=59 // pred_region
          %481 = dma.done %s474, 256
        $region68: #{tpu_custom_call.1} parent=59 // pred_fallthru
          _
        // Predicated region
        $region69: #{tpu_custom_call.1} parent=59 // pred_check
          %p482 = pneg %p106
        $region70: #{tpu_custom_call.1} parent=59 // pred_check_branch
          %484 = sbr.rel (%p482) target = $region72
        $region71: #{tpu_custom_call.1} parent=59 // pred_region
          %485 = dma.done [#allocation6], 4096
        $region72: #{tpu_custom_call.1} parent=59 // pred_fallthru
          _
        // Predicated region
        $region73: #{tpu_custom_call.1} parent=59 // pred_check
          %p486 = pneg %p148
        $region74: #{tpu_custom_call.1} parent=59 // pred_check_branch
          %488 = sbr.rel (%p486) target = $region76
        $region75: #{tpu_custom_call.1} parent=59 // pred_region
          %489 = dma.done [#allocation9], 4096
        $region76: #{tpu_custom_call.1} parent=59 // pred_fallthru
          _
        // Predicated region
        $region77: #{tpu_custom_call.1} parent=59 // pred_check
          %p490 = pneg %p190
        $region78: #{tpu_custom_call.1} parent=59 // pred_check_branch
          %492 = sbr.rel (%p490) target = $region80
        $region79: #{tpu_custom_call.1} parent=59 // pred_region
          %493 = dma.done [#allocation9], 4096
        $region80: #{tpu_custom_call.1} parent=59 // pred_fallthru
          _
        // Predicated region
        $region81: #{tpu_custom_call.1} parent=59 // pred_check
          %p494 = pneg %p232
        $region82: #{tpu_custom_call.1} parent=59 // pred_check_branch
          %496 = sbr.rel (%p494) target = $region84
        $region83: #{tpu_custom_call.1} parent=59 // pred_region
          %497 = dma.done [#allocation12], 2048
        $region84: #{tpu_custom_call.1} parent=59 // pred_fallthru
          _
        %s498 = sand.u32 %s46, 1
        %s499 = scalar_lea.sflag [#allocation3], %s498
        %s500 = sand.u32 %s46, 1
        %s501 = smul.addr %s500, 16
        %s502 = scalar_lea.vmem [#allocation2], %s501
        %p503 = pneg %p59
        %p504 = pneg %p56
        %s505 = sand.u32 %s38, 1
        %s506 = scalar_lea.sflag [#allocation6], %s505
        %s507 = sand.u32 %s72, 1
        %s508 = smul.addr %s507, 16
        %s509 = scalar_lea.vmem [#allocation5], %s508
        %p510 = pneg %p85
        %p511 = pneg %p82
        %p512 = pneg %p106
        %p513 = pneg %p103
        %p514 = pneg %p127
        %p515 = pneg %p124
        %p516 = pneg %p148
        %p517 = pneg %p145
        %p518 = pneg %p169
        %p519 = pneg %p166
        %p520 = pneg %p190
        %p521 = pneg %p187
        %p522 = pneg %p211
        %p523 = pneg %p208
        %p524 = pneg %p232
        %p525 = pneg %p229
        %p526 = pneg %p253
        %p527 = pneg %p250
        %p528 = pneg %p279
        %p529 = pneg %p276
        %s530 = sand.u32 %s266, 1
        %s531 = scalar_lea.sflag [#allocation4], %s530
        %s532 = sand.u32 %s266, 1
        %s533 = smul.addr %s532, 16
        %s534 = scalar_lea.vmem [#allocation13], %s533
        %p535 = pneg %p305
        %p536 = pneg %p302
        %s537 = sand.u32 %s38, 1
        %s538 = scalar_lea.sflag [#allocation15], %s537
        %s539 = sand.u32 %s292, 1
        %s540 = smul.addr %s539, 16
        %s541 = scalar_lea.vmem [#allocation14], %s540
        %p542 = pneg %p331
        %p543 = pneg %p328
        %s544 = sand.u32 %s38, 1
        %s545 = scalar_lea.sflag [#allocation15], %s544
        %s546 = sand.u32 %s318, 1
        %s547 = smul.addr %s546, 16
        %s548 = scalar_lea.vmem [#allocation16], %s547
        %s549 = smul.u32 2, %s38
        %s550 = smul.u32 2, %s38
        %s551 = smul.u32 2, %s38
        %s552 = smul.u32 2, %s38
        %s553 = smul.u32 2, %s38
        %v555 = vld [vmem:[%s468] sm:$0xff]
        %v556 = vld [vmem:[%s468 + $0x8] sm:$0xff]
        %v557 = vld [vmem:[#allocation7] sm:$0xff]
        %v558 = vld [vmem:[#allocation7 + $0x8] sm:$0xff]
        %v559 = vld [vmem:[#allocation7 + $0x10] sm:$0xff]
        %v560 = vld [vmem:[#allocation7 + $0x18] sm:$0xff]
        %v561 = vld [vmem:[#allocation7 + $0x20] sm:$0xff]
        %v562 = vld [vmem:[#allocation7 + $0x28] sm:$0xff]
        %v563 = vld [vmem:[#allocation7 + $0x30] sm:$0xff]
        %v564 = vld [vmem:[#allocation7 + $0x38] sm:$0xff]
        %v565 = vld [vmem:[#allocation7 + $0x40] sm:$0xff]
        %v566 = vld [vmem:[#allocation7 + $0x48] sm:$0xff]
        %v567 = vld [vmem:[#allocation7 + $0x50] sm:$0xff]
        %v568 = vld [vmem:[#allocation7 + $0x58] sm:$0xff]
        %v569 = vld [vmem:[#allocation7 + $0x60] sm:$0xff]
        %v570 = vld [vmem:[#allocation7 + $0x68] sm:$0xff]
        %v571 = vld [vmem:[#allocation7 + $0x70] sm:$0xff]
        %v572 = vld [vmem:[#allocation7 + $0x78] sm:$0xff]
        %v573 = vld [vmem:[#allocation7 + $0x80] sm:$0xff]
        %v574 = vld [vmem:[#allocation7 + $0x88] sm:$0xff]
        %v575 = vld [vmem:[#allocation7 + $0x90] sm:$0xff]
        %v576 = vld [vmem:[#allocation7 + $0x98] sm:$0xff]
        %v577 = vld [vmem:[#allocation7 + $0xa0] sm:$0xff]
        %v578 = vld [vmem:[#allocation7 + $0xa8] sm:$0xff]
        %v579 = vld [vmem:[#allocation7 + $0xb0] sm:$0xff]
        %v580 = vld [vmem:[#allocation7 + $0xb8] sm:$0xff]
        %v581 = vld [vmem:[#allocation7 + $0xc0] sm:$0xff]
        %v582 = vld [vmem:[#allocation7 + $0xc8] sm:$0xff]
        %v583 = vld [vmem:[#allocation7 + $0xd0] sm:$0xff]
        %v584 = vld [vmem:[#allocation7 + $0xd8] sm:$0xff]
        %v585 = vld [vmem:[#allocation7 + $0xe0] sm:$0xff]
        %v586 = vld [vmem:[#allocation7 + $0xe8] sm:$0xff]
        %v587 = vld [vmem:[#allocation7 + $0xf0] sm:$0xff]
        %v588 = vld [vmem:[#allocation7 + $0xf8] sm:$0xff]
        %v589 = vld [vmem:[%s3] sm:$0x3]
        %v591 = vlaneseq
        %v592 = vshrl.u32 %v591, 7
        %v593 = vsub.s32 0, %v592
        %v594 = vrot.slane %v589, %v593
        %v595 = vlaneseq
        %v596 = vshrl.u32 %v595, 7
        %v597 = vsub.s32 1, %v596
        %v598 = vrot.slane %v589, %v597
        %v603 = vunpack.c.l.b16 %v555
        %v604 = vunpack.c.h.b16 %v555
        %v605 = vunpack.c.l.b16 %v556
        %v606 = vunpack.c.h.b16 %v556
        %v607 = vpack.c.b16 %v605, %v603
        %v608 = vpack.c.b16 %v606, %v604
        %v643 = vunpack.c.l.b16 %v557
        %v644 = vunpack.c.h.b16 %v557
        %v645 = vunpack.c.l.b16 %v558
        %v646 = vunpack.c.h.b16 %v558
        %v647 = vunpack.c.l.b16 %v559
        %v648 = vunpack.c.h.b16 %v559
        %v649 = vunpack.c.l.b16 %v560
        %v650 = vunpack.c.h.b16 %v560
        %v651 = vunpack.c.l.b16 %v561
        %v652 = vunpack.c.h.b16 %v561
        %v653 = vunpack.c.l.b16 %v562
        %v654 = vunpack.c.h.b16 %v562
        %v655 = vunpack.c.l.b16 %v563
        %v656 = vunpack.c.h.b16 %v563
        %v657 = vunpack.c.l.b16 %v564
        %v658 = vunpack.c.h.b16 %v564
        %v659 = vunpack.c.l.b16 %v565
        %v660 = vunpack.c.h.b16 %v565
        %v661 = vunpack.c.l.b16 %v566
        %v662 = vunpack.c.h.b16 %v566
        %v663 = vunpack.c.l.b16 %v567
        %v664 = vunpack.c.h.b16 %v567
        %v665 = vunpack.c.l.b16 %v568
        %v666 = vunpack.c.h.b16 %v568
        %v667 = vunpack.c.l.b16 %v569
        %v668 = vunpack.c.h.b16 %v569
        %v669 = vunpack.c.l.b16 %v570
        %v670 = vunpack.c.h.b16 %v570
        %v671 = vunpack.c.l.b16 %v571
        %v672 = vunpack.c.h.b16 %v571
        %v673 = vunpack.c.l.b16 %v572
        %v674 = vunpack.c.h.b16 %v572
        %v675 = vunpack.c.l.b16 %v573
        %v676 = vunpack.c.h.b16 %v573
        %v677 = vunpack.c.l.b16 %v574
        %v678 = vunpack.c.h.b16 %v574
        %v679 = vunpack.c.l.b16 %v575
        %v680 = vunpack.c.h.b16 %v575
        %v681 = vunpack.c.l.b16 %v576
        %v682 = vunpack.c.h.b16 %v576
        %v683 = vunpack.c.l.b16 %v577
        %v684 = vunpack.c.h.b16 %v577
        %v685 = vunpack.c.l.b16 %v578
        %v686 = vunpack.c.h.b16 %v578
        %v687 = vunpack.c.l.b16 %v579
        %v688 = vunpack.c.h.b16 %v579
        %v689 = vunpack.c.l.b16 %v580
        %v690 = vunpack.c.h.b16 %v580
        %v691 = vunpack.c.l.b16 %v581
        %v692 = vunpack.c.h.b16 %v581
        %v693 = vunpack.c.l.b16 %v582
        %v694 = vunpack.c.h.b16 %v582
        %v695 = vunpack.c.l.b16 %v583
        %v696 = vunpack.c.h.b16 %v583
        %v697 = vunpack.c.l.b16 %v584
        %v698 = vunpack.c.h.b16 %v584
        %v699 = vunpack.c.l.b16 %v585
        %v700 = vunpack.c.h.b16 %v585
        %v701 = vunpack.c.l.b16 %v586
        %v702 = vunpack.c.h.b16 %v586
        %v703 = vunpack.c.l.b16 %v587
        %v704 = vunpack.c.h.b16 %v587
        %v705 = vunpack.c.l.b16 %v588
        %v706 = vunpack.c.h.b16 %v588
        %v707 = vpack.c.b16 %v645, %v643
        %v708 = vpack.c.b16 %v646, %v644
        %v709 = vpack.c.b16 %v649, %v647
        %v710 = vpack.c.b16 %v650, %v648
        %v711 = vpack.c.b16 %v653, %v651
        %v712 = vpack.c.b16 %v654, %v652
        %v713 = vpack.c.b16 %v657, %v655
        %v714 = vpack.c.b16 %v658, %v656
        %v715 = vpack.c.b16 %v661, %v659
        %v716 = vpack.c.b16 %v662, %v660
        %v717 = vpack.c.b16 %v665, %v663
        %v718 = vpack.c.b16 %v666, %v664
        %v719 = vpack.c.b16 %v669, %v667
        %v720 = vpack.c.b16 %v670, %v668
        %v721 = vpack.c.b16 %v673, %v671
        %v722 = vpack.c.b16 %v674, %v672
        %v723 = vpack.c.b16 %v677, %v675
        %v724 = vpack.c.b16 %v678, %v676
        %v725 = vpack.c.b16 %v681, %v679
        %v726 = vpack.c.b16 %v682, %v680
        %v727 = vpack.c.b16 %v685, %v683
        %v728 = vpack.c.b16 %v686, %v684
        %v729 = vpack.c.b16 %v689, %v687
        %v730 = vpack.c.b16 %v690, %v688
        %v731 = vpack.c.b16 %v693, %v691
        %v732 = vpack.c.b16 %v694, %v692
        %v733 = vpack.c.b16 %v697, %v695
        %v734 = vpack.c.b16 %v698, %v696
        %v735 = vpack.c.b16 %v701, %v699
        %v736 = vpack.c.b16 %v702, %v700
        %v737 = vpack.c.b16 %v705, %v703
        %v738 = vpack.c.b16 %v706, %v704
        %771 = vmatprep.subr.bf16.mxu0 %v708
        %772 = vmatpush1.bf16.msra.mxu0 %v707
        %773 = vmatprep.subr.bf16.mxu0 %v710
        %774 = vmatpush1.bf16.msra.mxu0 %v709
        %775 = vmatprep.subr.bf16.mxu0 %v712
        %776 = vmatpush1.bf16.msra.mxu0 %v711
        %777 = vmatprep.subr.bf16.mxu0 %v714
        %778 = vmatpush1.bf16.msra.mxu0 %v713
        %779 = vmatprep.subr.bf16.mxu0 %v716
        %780 = vmatpush1.bf16.msra.mxu0 %v715
        %781 = vmatprep.subr.bf16.mxu0 %v718
        %782 = vmatpush1.bf16.msra.mxu0 %v717
        %783 = vmatprep.subr.bf16.mxu0 %v720
        %784 = vmatpush1.bf16.msra.mxu0 %v719
        %785 = vmatprep.subr.bf16.mxu0 %v722
        %786 = vmatpush1.bf16.msra.mxu0 %v721
        %787 = vmatprep.subr.bf16.mxu0 %v724
        %788 = vmatpush1.bf16.msra.mxu0 %v723
        %789 = vmatprep.subr.bf16.mxu0 %v726
        %790 = vmatpush1.bf16.msra.mxu0 %v725
        %791 = vmatprep.subr.bf16.mxu0 %v728
        %792 = vmatpush1.bf16.msra.mxu0 %v727
        %793 = vmatprep.subr.bf16.mxu0 %v730
        %794 = vmatpush1.bf16.msra.mxu0 %v729
        %795 = vmatprep.subr.bf16.mxu0 %v732
        %796 = vmatpush1.bf16.msra.mxu0 %v731
        %797 = vmatprep.subr.bf16.mxu0 %v734
        %798 = vmatpush1.bf16.msra.mxu0 %v733
        %799 = vmatprep.subr.bf16.mxu0 %v736
        %800 = vmatpush1.bf16.msra.mxu0 %v735
        %801 = vmatprep.subr.bf16.mxu0 %v738
        %802 = vmatpush1.bf16.msra.mxu0 %v737
        %803 = vmatprep.mubr.bf16.mxu0 %v608
        %804 = vmatmul.mubr.bf16.gmra.mrb[0].mxu0 %v607
        %v805 = vpop.f32.mrb[0].mxu0
        %v806 = vadd.f32 %v594, %v805
        %v807 = vpop.f32.mrb[0].mxu0
        %v808 = vadd.f32 %v598, %v807
        %v809 = vpop.f32.mrb[0].mxu0
        %v810 = vadd.f32 %v594, %v809
        %v811 = vpop.f32.mrb[0].mxu0
        %v812 = vadd.f32 %v598, %v811
        %813 = vdwg.mxu0
        %v814 = vmax.f32 %v806, 0.0
        %v815 = vmax.f32 %v808, 0.0
        %v816 = vmax.f32 %v810, 0.0
        %v817 = vmax.f32 %v812, 0.0
        %v818 = vand.u32 2147483647, %v806
        %v819 = vand.u32 2147483647, %v808
        %v820 = vand.u32 2147483647, %v810
        %v821 = vand.u32 2147483647, %v812
        %v822 = vsub.f32 0.0, %v818
        %v823 = vsub.f32 0.0, %v819
        %v824 = vsub.f32 0.0, %v820
        %v825 = vsub.f32 0.0, %v821
        %v826 = vmul.f32 %v822, 1.442695
        %v827 = vpow.pop %v826
        %v828 = vmul.f32 %v823, 1.442695
        %v829 = vpow.pop %v828
        %v830 = vmul.f32 %v824, 1.442695
        %v831 = vpow.pop %v830
        %v832 = vmul.f32 %v825, 1.442695
        %v833 = vpow.pop %v832
        %v834 = vadd.f32 %v827, 1.0
        %v835 = vadd.f32 %v829, 1.0
        %v836 = vadd.f32 %v831, 1.0
        %v837 = vadd.f32 %v833, 1.0
        %v838 = vlog2.pop %v834
        %v839 = vmul.f32 %v838, 0.6931472
        %v840 = vlog2.pop %v835
        %v841 = vmul.f32 %v840, 0.6931472
        %v842 = vlog2.pop %v836
        %v843 = vmul.f32 %v842, 0.6931472
        %v844 = vlog2.pop %v837
        %v845 = vmul.f32 %v844, 0.6931472
        %v846 = vadd.f32 %v814, %v839
        %v847 = vadd.f32 %v815, %v841
        %v848 = vadd.f32 %v816, %v843
        %v849 = vadd.f32 %v817, %v845
        %v850 = vpack.c.bf16 %v848, %v846
        %v851 = vpack.c.bf16 %v849, %v847
        %v852 = vld [vmem:[#allocation8] sm:$0xff]
        %v853 = vld [vmem:[#allocation8 + $0x8] sm:$0xff]
        %v854 = vld [vmem:[#allocation8 + $0x10] sm:$0xff]
        %v855 = vld [vmem:[#allocation8 + $0x18] sm:$0xff]
        %v856 = vld [vmem:[#allocation8 + $0x20] sm:$0xff]
        %v857 = vld [vmem:[#allocation8 + $0x28] sm:$0xff]
        %v858 = vld [vmem:[#allocation8 + $0x30] sm:$0xff]
        %v859 = vld [vmem:[#allocation8 + $0x38] sm:$0xff]
        %v860 = vld [vmem:[#allocation8 + $0x40] sm:$0xff]
        %v861 = vld [vmem:[#allocation8 + $0x48] sm:$0xff]
        %v862 = vld [vmem:[#allocation8 + $0x50] sm:$0xff]
        %v863 = vld [vmem:[#allocation8 + $0x58] sm:$0xff]
        %v864 = vld [vmem:[#allocation8 + $0x60] sm:$0xff]
        %v865 = vld [vmem:[#allocation8 + $0x68] sm:$0xff]
        %v866 = vld [vmem:[#allocation8 + $0x70] sm:$0xff]
        %v867 = vld [vmem:[#allocation8 + $0x78] sm:$0xff]
        %v868 = vld [vmem:[#allocation8 + $0x80] sm:$0xff]
        %v869 = vld [vmem:[#allocation8 + $0x88] sm:$0xff]
        %v870 = vld [vmem:[#allocation8 + $0x90] sm:$0xff]
        %v871 = vld [vmem:[#allocation8 + $0x98] sm:$0xff]
        %v872 = vld [vmem:[#allocation8 + $0xa0] sm:$0xff]
        %v873 = vld [vmem:[#allocation8 + $0xa8] sm:$0xff]
        %v874 = vld [vmem:[#allocation8 + $0xb0] sm:$0xff]
        %v875 = vld [vmem:[#allocation8 + $0xb8] sm:$0xff]
        %v876 = vld [vmem:[#allocation8 + $0xc0] sm:$0xff]
        %v877 = vld [vmem:[#allocation8 + $0xc8] sm:$0xff]
        %v878 = vld [vmem:[#allocation8 + $0xd0] sm:$0xff]
        %v879 = vld [vmem:[#allocation8 + $0xd8] sm:$0xff]
        %v880 = vld [vmem:[#allocation8 + $0xe0] sm:$0xff]
        %v881 = vld [vmem:[#allocation8 + $0xe8] sm:$0xff]
        %v882 = vld [vmem:[#allocation8 + $0xf0] sm:$0xff]
        %v883 = vld [vmem:[#allocation8 + $0xf8] sm:$0xff]
        %v884 = vld [vmem:[%s5] sm:$0x3]
        %v886 = vlaneseq
        %v887 = vshrl.u32 %v886, 7
        %v888 = vsub.s32 0, %v887
        %v889 = vrot.slane %v884, %v888
        %v890 = vlaneseq
        %v891 = vshrl.u32 %v890, 7
        %v892 = vsub.s32 1, %v891
        %v893 = vrot.slane %v884, %v892
        %v928 = vunpack.c.l.b16 %v852
        %v929 = vunpack.c.h.b16 %v852
        %v930 = vunpack.c.l.b16 %v853
        %v931 = vunpack.c.h.b16 %v853
        %v932 = vunpack.c.l.b16 %v854
        %v933 = vunpack.c.h.b16 %v854
        %v934 = vunpack.c.l.b16 %v855
        %v935 = vunpack.c.h.b16 %v855
        %v936 = vunpack.c.l.b16 %v856
        %v937 = vunpack.c.h.b16 %v856
        %v938 = vunpack.c.l.b16 %v857
        %v939 = vunpack.c.h.b16 %v857
        %v940 = vunpack.c.l.b16 %v858
        %v941 = vunpack.c.h.b16 %v858
        %v942 = vunpack.c.l.b16 %v859
        %v943 = vunpack.c.h.b16 %v859
        %v944 = vunpack.c.l.b16 %v860
        %v945 = vunpack.c.h.b16 %v860
        %v946 = vunpack.c.l.b16 %v861
        %v947 = vunpack.c.h.b16 %v861
        %v948 = vunpack.c.l.b16 %v862
        %v949 = vunpack.c.h.b16 %v862
        %v950 = vunpack.c.l.b16 %v863
        %v951 = vunpack.c.h.b16 %v863
        %v952 = vunpack.c.l.b16 %v864
        %v953 = vunpack.c.h.b16 %v864
        %v954 = vunpack.c.l.b16 %v865
        %v955 = vunpack.c.h.b16 %v865
        %v956 = vunpack.c.l.b16 %v866
        %v957 = vunpack.c.h.b16 %v866
        %v958 = vunpack.c.l.b16 %v867
        %v959 = vunpack.c.h.b16 %v867
        %v960 = vunpack.c.l.b16 %v868
        %v961 = vunpack.c.h.b16 %v868
        %v962 = vunpack.c.l.b16 %v869
        %v963 = vunpack.c.h.b16 %v869
        %v964 = vunpack.c.l.b16 %v870
        %v965 = vunpack.c.h.b16 %v870
        %v966 = vunpack.c.l.b16 %v871
        %v967 = vunpack.c.h.b16 %v871
        %v968 = vunpack.c.l.b16 %v872
        %v969 = vunpack.c.h.b16 %v872
        %v970 = vunpack.c.l.b16 %v873
        %v971 = vunpack.c.h.b16 %v873
        %v972 = vunpack.c.l.b16 %v874
        %v973 = vunpack.c.h.b16 %v874
        %v974 = vunpack.c.l.b16 %v875
        %v975 = vunpack.c.h.b16 %v875
        %v976 = vunpack.c.l.b16 %v876
        %v977 = vunpack.c.h.b16 %v876
        %v978 = vunpack.c.l.b16 %v877
        %v979 = vunpack.c.h.b16 %v877
        %v980 = vunpack.c.l.b16 %v878
        %v981 = vunpack.c.h.b16 %v878
        %v982 = vunpack.c.l.b16 %v879
        %v983 = vunpack.c.h.b16 %v879
        %v984 = vunpack.c.l.b16 %v880
        %v985 = vunpack.c.h.b16 %v880
        %v986 = vunpack.c.l.b16 %v881
        %v987 = vunpack.c.h.b16 %v881
        %v988 = vunpack.c.l.b16 %v882
        %v989 = vunpack.c.h.b16 %v882
        %v990 = vunpack.c.l.b16 %v883
        %v991 = vunpack.c.h.b16 %v883
        %v992 = vpack.c.b16 %v930, %v928
        %v993 = vpack.c.b16 %v931, %v929
        %v994 = vpack.c.b16 %v934, %v932
        %v995 = vpack.c.b16 %v935, %v933
        %v996 = vpack.c.b16 %v938, %v936
        %v997 = vpack.c.b16 %v939, %v937
        %v998 = vpack.c.b16 %v942, %v940
        %v999 = vpack.c.b16 %v943, %v941
        %v1000 = vpack.c.b16 %v946, %v944
        %v1001 = vpack.c.b16 %v947, %v945
        %v1002 = vpack.c.b16 %v950, %v948
        %v1003 = vpack.c.b16 %v951, %v949
        %v1004 = vpack.c.b16 %v954, %v952
        %v1005 = vpack.c.b16 %v955, %v953
        %v1006 = vpack.c.b16 %v958, %v956
        %v1007 = vpack.c.b16 %v959, %v957
        %v1008 = vpack.c.b16 %v962, %v960
        %v1009 = vpack.c.b16 %v963, %v961
        %v1010 = vpack.c.b16 %v966, %v964
        %v1011 = vpack.c.b16 %v967, %v965
        %v1012 = vpack.c.b16 %v970, %v968
        %v1013 = vpack.c.b16 %v971, %v969
        %v1014 = vpack.c.b16 %v974, %v972
        %v1015 = vpack.c.b16 %v975, %v973
        %v1016 = vpack.c.b16 %v978, %v976
        %v1017 = vpack.c.b16 %v979, %v977
        %v1018 = vpack.c.b16 %v982, %v980
        %v1019 = vpack.c.b16 %v983, %v981
        %v1020 = vpack.c.b16 %v986, %v984
        %v1021 = vpack.c.b16 %v987, %v985
        %v1022 = vpack.c.b16 %v990, %v988
        %v1023 = vpack.c.b16 %v991, %v989
        %1056 = vmatprep.subr.bf16.mxu0 %v993
        %1057 = vmatpush1.bf16.msra.mxu0 %v992
        %1058 = vmatprep.subr.bf16.mxu0 %v995
        %1059 = vmatpush1.bf16.msra.mxu0 %v994
        %1060 = vmatprep.subr.bf16.mxu0 %v997
        %1061 = vmatpush1.bf16.msra.mxu0 %v996
        %1062 = vmatprep.subr.bf16.mxu0 %v999
        %1063 = vmatpush1.bf16.msra.mxu0 %v998
        %1064 = vmatprep.subr.bf16.mxu0 %v1001
        %1065 = vmatpush1.bf16.msra.mxu0 %v1000
        %1066 = vmatprep.subr.bf16.mxu0 %v1003
        %1067 = vmatpush1.bf16.msra.mxu0 %v1002
        %1068 = vmatprep.subr.bf16.mxu0 %v1005
        %1069 = vmatpush1.bf16.msra.mxu0 %v1004
        %1070 = vmatprep.subr.bf16.mxu0 %v1007
        %1071 = vmatpush1.bf16.msra.mxu0 %v1006
        %1072 = vmatprep.subr.bf16.mxu0 %v1009
        %1073 = vmatpush1.bf16.msra.mxu0 %v1008
        %1074 = vmatprep.subr.bf16.mxu0 %v1011
        %1075 = vmatpush1.bf16.msra.mxu0 %v1010
        %1076 = vmatprep.subr.bf16.mxu0 %v1013
        %1077 = vmatpush1.bf16.msra.mxu0 %v1012
        %1078 = vmatprep.subr.bf16.mxu0 %v1015
        %1079 = vmatpush1.bf16.msra.mxu0 %v1014
        %1080 = vmatprep.subr.bf16.mxu0 %v1017
        %1081 = vmatpush1.bf16.msra.mxu0 %v1016
        %1082 = vmatprep.subr.bf16.mxu0 %v1019
        %1083 = vmatpush1.bf16.msra.mxu0 %v1018
        %1084 = vmatprep.subr.bf16.mxu0 %v1021
        %1085 = vmatpush1.bf16.msra.mxu0 %v1020
        %1086 = vmatprep.subr.bf16.mxu0 %v1023
        %1087 = vmatpush1.bf16.msra.mxu0 %v1022
        %1088 = vmatprep.mubr.bf16.mxu0 %v851
        %1089 = vmatmul.mubr.bf16.gmra.mrb[0].mxu0 %v850
        %v1090 = vpop.f32.mrb[0].mxu0
        %v1091 = vadd.f32 %v889, %v1090
        %v1092 = vpop.f32.mrb[0].mxu0
        %v1093 = vadd.f32 %v893, %v1092
        %v1094 = vpop.f32.mrb[0].mxu0
        %v1095 = vadd.f32 %v889, %v1094
        %v1096 = vpop.f32.mrb[0].mxu0
        %v1097 = vadd.f32 %v893, %v1096
        %1098 = vdwg.mxu0
        %v1099 = vmax.f32 %v1091, 0.0
        %v1100 = vmax.f32 %v1093, 0.0
        %v1101 = vmax.f32 %v1095, 0.0
        %v1102 = vmax.f32 %v1097, 0.0
        %v1103 = vand.u32 2147483647, %v1091
        %v1104 = vand.u32 2147483647, %v1093
        %v1105 = vand.u32 2147483647, %v1095
        %v1106 = vand.u32 2147483647, %v1097
        %v1107 = vsub.f32 0.0, %v1103
        %v1108 = vsub.f32 0.0, %v1104
        %v1109 = vsub.f32 0.0, %v1105
        %v1110 = vsub.f32 0.0, %v1106
        %v1111 = vmul.f32 %v1107, 1.442695
        %v1112 = vpow.pop %v1111
        %v1113 = vmul.f32 %v1108, 1.442695
        %v1114 = vpow.pop %v1113
        %v1115 = vmul.f32 %v1109, 1.442695
        %v1116 = vpow.pop %v1115
        %v1117 = vmul.f32 %v1110, 1.442695
        %v1118 = vpow.pop %v1117
        %v1119 = vadd.f32 %v1112, 1.0
        %v1120 = vadd.f32 %v1114, 1.0
        %v1121 = vadd.f32 %v1116, 1.0
        %v1122 = vadd.f32 %v1118, 1.0
        %v1123 = vlog2.pop %v1119
        %v1124 = vmul.f32 %v1123, 0.6931472
        %v1125 = vlog2.pop %v1120
        %v1126 = vmul.f32 %v1125, 0.6931472
        %v1127 = vlog2.pop %v1121
        %v1128 = vmul.f32 %v1127, 0.6931472
        %v1129 = vlog2.pop %v1122
        %v1130 = vmul.f32 %v1129, 0.6931472
        %v1131 = vadd.f32 %v1099, %v1124
        %v1132 = vadd.f32 %v1100, %v1126
        %v1133 = vadd.f32 %v1101, %v1128
        %v1134 = vadd.f32 %v1102, %v1130
        %v1135 = vpack.c.bf16 %v1133, %v1131
        %v1136 = vpack.c.bf16 %v1134, %v1132
        %v1137 = vld [vmem:[#allocation10] sm:$0xff]
        %v1138 = vld [vmem:[#allocation10 + $0x8] sm:$0xff]
        %v1139 = vld [vmem:[#allocation10 + $0x10] sm:$0xff]
        %v1140 = vld [vmem:[#allocation10 + $0x18] sm:$0xff]
        %v1141 = vld [vmem:[#allocation10 + $0x20] sm:$0xff]
        %v1142 = vld [vmem:[#allocation10 + $0x28] sm:$0xff]
        %v1143 = vld [vmem:[#allocation10 + $0x30] sm:$0xff]
        %v1144 = vld [vmem:[#allocation10 + $0x38] sm:$0xff]
        %v1145 = vld [vmem:[#allocation10 + $0x40] sm:$0xff]
        %v1146 = vld [vmem:[#allocation10 + $0x48] sm:$0xff]
        %v1147 = vld [vmem:[#allocation10 + $0x50] sm:$0xff]
        %v1148 = vld [vmem:[#allocation10 + $0x58] sm:$0xff]
        %v1149 = vld [vmem:[#allocation10 + $0x60] sm:$0xff]
        %v1150 = vld [vmem:[#allocation10 + $0x68] sm:$0xff]
        %v1151 = vld [vmem:[#allocation10 + $0x70] sm:$0xff]
        %v1152 = vld [vmem:[#allocation10 + $0x78] sm:$0xff]
        %v1153 = vld [vmem:[#allocation10 + $0x80] sm:$0xff]
        %v1154 = vld [vmem:[#allocation10 + $0x88] sm:$0xff]
        %v1155 = vld [vmem:[#allocation10 + $0x90] sm:$0xff]
        %v1156 = vld [vmem:[#allocation10 + $0x98] sm:$0xff]
        %v1157 = vld [vmem:[#allocation10 + $0xa0] sm:$0xff]
        %v1158 = vld [vmem:[#allocation10 + $0xa8] sm:$0xff]
        %v1159 = vld [vmem:[#allocation10 + $0xb0] sm:$0xff]
        %v1160 = vld [vmem:[#allocation10 + $0xb8] sm:$0xff]
        %v1161 = vld [vmem:[#allocation10 + $0xc0] sm:$0xff]
        %v1162 = vld [vmem:[#allocation10 + $0xc8] sm:$0xff]
        %v1163 = vld [vmem:[#allocation10 + $0xd0] sm:$0xff]
        %v1164 = vld [vmem:[#allocation10 + $0xd8] sm:$0xff]
        %v1165 = vld [vmem:[#allocation10 + $0xe0] sm:$0xff]
        %v1166 = vld [vmem:[#allocation10 + $0xe8] sm:$0xff]
        %v1167 = vld [vmem:[#allocation10 + $0xf0] sm:$0xff]
        %v1168 = vld [vmem:[#allocation10 + $0xf8] sm:$0xff]
        %v1169 = vld [vmem:[%s7] sm:$0x3]
        %v1171 = vlaneseq
        %v1172 = vshrl.u32 %v1171, 7
        %v1173 = vsub.s32 0, %v1172
        %v1174 = vrot.slane %v1169, %v1173
        %v1175 = vlaneseq
        %v1176 = vshrl.u32 %v1175, 7
        %v1177 = vsub.s32 1, %v1176
        %v1178 = vrot.slane %v1169, %v1177
        %v1213 = vunpack.c.l.b16 %v1137
        %v1214 = vunpack.c.h.b16 %v1137
        %v1215 = vunpack.c.l.b16 %v1138
        %v1216 = vunpack.c.h.b16 %v1138
        %v1217 = vunpack.c.l.b16 %v1139
        %v1218 = vunpack.c.h.b16 %v1139
        %v1219 = vunpack.c.l.b16 %v1140
        %v1220 = vunpack.c.h.b16 %v1140
        %v1221 = vunpack.c.l.b16 %v1141
        %v1222 = vunpack.c.h.b16 %v1141
        %v1223 = vunpack.c.l.b16 %v1142
        %v1224 = vunpack.c.h.b16 %v1142
        %v1225 = vunpack.c.l.b16 %v1143
        %v1226 = vunpack.c.h.b16 %v1143
        %v1227 = vunpack.c.l.b16 %v1144
        %v1228 = vunpack.c.h.b16 %v1144
        %v1229 = vunpack.c.l.b16 %v1145
        %v1230 = vunpack.c.h.b16 %v1145
        %v1231 = vunpack.c.l.b16 %v1146
        %v1232 = vunpack.c.h.b16 %v1146
        %v1233 = vunpack.c.l.b16 %v1147
        %v1234 = vunpack.c.h.b16 %v1147
        %v1235 = vunpack.c.l.b16 %v1148
        %v1236 = vunpack.c.h.b16 %v1148
        %v1237 = vunpack.c.l.b16 %v1149
        %v1238 = vunpack.c.h.b16 %v1149
        %v1239 = vunpack.c.l.b16 %v1150
        %v1240 = vunpack.c.h.b16 %v1150
        %v1241 = vunpack.c.l.b16 %v1151
        %v1242 = vunpack.c.h.b16 %v1151
        %v1243 = vunpack.c.l.b16 %v1152
        %v1244 = vunpack.c.h.b16 %v1152
        %v1245 = vunpack.c.l.b16 %v1153
        %v1246 = vunpack.c.h.b16 %v1153
        %v1247 = vunpack.c.l.b16 %v1154
        %v1248 = vunpack.c.h.b16 %v1154
        %v1249 = vunpack.c.l.b16 %v1155
        %v1250 = vunpack.c.h.b16 %v1155
        %v1251 = vunpack.c.l.b16 %v1156
        %v1252 = vunpack.c.h.b16 %v1156
        %v1253 = vunpack.c.l.b16 %v1157
        %v1254 = vunpack.c.h.b16 %v1157
        %v1255 = vunpack.c.l.b16 %v1158
        %v1256 = vunpack.c.h.b16 %v1158
        %v1257 = vunpack.c.l.b16 %v1159
        %v1258 = vunpack.c.h.b16 %v1159
        %v1259 = vunpack.c.l.b16 %v1160
        %v1260 = vunpack.c.h.b16 %v1160
        %v1261 = vunpack.c.l.b16 %v1161
        %v1262 = vunpack.c.h.b16 %v1161
        %v1263 = vunpack.c.l.b16 %v1162
        %v1264 = vunpack.c.h.b16 %v1162
        %v1265 = vunpack.c.l.b16 %v1163
        %v1266 = vunpack.c.h.b16 %v1163
        %v1267 = vunpack.c.l.b16 %v1164
        %v1268 = vunpack.c.h.b16 %v1164
        %v1269 = vunpack.c.l.b16 %v1165
        %v1270 = vunpack.c.h.b16 %v1165
        %v1271 = vunpack.c.l.b16 %v1166
        %v1272 = vunpack.c.h.b16 %v1166
        %v1273 = vunpack.c.l.b16 %v1167
        %v1274 = vunpack.c.h.b16 %v1167
        %v1275 = vunpack.c.l.b16 %v1168
        %v1276 = vunpack.c.h.b16 %v1168
        %v1277 = vpack.c.b16 %v1215, %v1213
        %v1278 = vpack.c.b16 %v1216, %v1214
        %v1279 = vpack.c.b16 %v1219, %v1217
        %v1280 = vpack.c.b16 %v1220, %v1218
        %v1281 = vpack.c.b16 %v1223, %v1221
        %v1282 = vpack.c.b16 %v1224, %v1222
        %v1283 = vpack.c.b16 %v1227, %v1225
        %v1284 = vpack.c.b16 %v1228, %v1226
        %v1285 = vpack.c.b16 %v1231, %v1229
        %v1286 = vpack.c.b16 %v1232, %v1230
        %v1287 = vpack.c.b16 %v1235, %v1233
        %v1288 = vpack.c.b16 %v1236, %v1234
        %v1289 = vpack.c.b16 %v1239, %v1237
        %v1290 = vpack.c.b16 %v1240, %v1238
        %v1291 = vpack.c.b16 %v1243, %v1241
        %v1292 = vpack.c.b16 %v1244, %v1242
        %v1293 = vpack.c.b16 %v1247, %v1245
        %v1294 = vpack.c.b16 %v1248, %v1246
        %v1295 = vpack.c.b16 %v1251, %v1249
        %v1296 = vpack.c.b16 %v1252, %v1250
        %v1297 = vpack.c.b16 %v1255, %v1253
        %v1298 = vpack.c.b16 %v1256, %v1254
        %v1299 = vpack.c.b16 %v1259, %v1257
        %v1300 = vpack.c.b16 %v1260, %v1258
        %v1301 = vpack.c.b16 %v1263, %v1261
        %v1302 = vpack.c.b16 %v1264, %v1262
        %v1303 = vpack.c.b16 %v1267, %v1265
        %v1304 = vpack.c.b16 %v1268, %v1266
        %v1305 = vpack.c.b16 %v1271, %v1269
        %v1306 = vpack.c.b16 %v1272, %v1270
        %v1307 = vpack.c.b16 %v1275, %v1273
        %v1308 = vpack.c.b16 %v1276, %v1274
        %1341 = vmatprep.subr.bf16.mxu0 %v1278
        %1342 = vmatpush1.bf16.msra.mxu0 %v1277
        %1343 = vmatprep.subr.bf16.mxu0 %v1280
        %1344 = vmatpush1.bf16.msra.mxu0 %v1279
        %1345 = vmatprep.subr.bf16.mxu0 %v1282
        %1346 = vmatpush1.bf16.msra.mxu0 %v1281
        %1347 = vmatprep.subr.bf16.mxu0 %v1284
        %1348 = vmatpush1.bf16.msra.mxu0 %v1283
        %1349 = vmatprep.subr.bf16.mxu0 %v1286
        %1350 = vmatpush1.bf16.msra.mxu0 %v1285
        %1351 = vmatprep.subr.bf16.mxu0 %v1288
        %1352 = vmatpush1.bf16.msra.mxu0 %v1287
        %1353 = vmatprep.subr.bf16.mxu0 %v1290
        %1354 = vmatpush1.bf16.msra.mxu0 %v1289
        %1355 = vmatprep.subr.bf16.mxu0 %v1292
        %1356 = vmatpush1.bf16.msra.mxu0 %v1291
        %1357 = vmatprep.subr.bf16.mxu0 %v1294
        %1358 = vmatpush1.bf16.msra.mxu0 %v1293
        %1359 = vmatprep.subr.bf16.mxu0 %v1296
        %1360 = vmatpush1.bf16.msra.mxu0 %v1295
        %1361 = vmatprep.subr.bf16.mxu0 %v1298
        %1362 = vmatpush1.bf16.msra.mxu0 %v1297
        %1363 = vmatprep.subr.bf16.mxu0 %v1300
        %1364 = vmatpush1.bf16.msra.mxu0 %v1299
        %1365 = vmatprep.subr.bf16.mxu0 %v1302
        %1366 = vmatpush1.bf16.msra.mxu0 %v1301
        %1367 = vmatprep.subr.bf16.mxu0 %v1304
        %1368 = vmatpush1.bf16.msra.mxu0 %v1303
        %1369 = vmatprep.subr.bf16.mxu0 %v1306
        %1370 = vmatpush1.bf16.msra.mxu0 %v1305
        %1371 = vmatprep.subr.bf16.mxu0 %v1308
        %1372 = vmatpush1.bf16.msra.mxu0 %v1307
        %1373 = vmatprep.mubr.bf16.mxu0 %v1136
        %1374 = vmatmul.mubr.bf16.gmra.mrb[0].mxu0 %v1135
        %v1375 = vpop.f32.mrb[0].mxu0
        %v1376 = vadd.f32 %v1174, %v1375
        %v1377 = vpop.f32.mrb[0].mxu0
        %v1378 = vadd.f32 %v1178, %v1377
        %v1379 = vpop.f32.mrb[0].mxu0
        %v1380 = vadd.f32 %v1174, %v1379
        %v1381 = vpop.f32.mrb[0].mxu0
        %v1382 = vadd.f32 %v1178, %v1381
        %1383 = vdwg.mxu0
        %v1384 = vmul.f32 %v1378, 1.442695
        %v1385 = vpow.pop %v1384
        %v1386 = vmul.f32 %v1382, 1.442695
        %v1387 = vpow.pop %v1386
        %v1388 = vld [vmem:[%s477] sm:$0xff]
        %v1389 = vld [vmem:[%s477 + $0x8] sm:$0xff]
        %v1390 = vmul.f32 %v1385, %v1388
        %v1391 = vmul.f32 %v1387, %v1389
        %v1392 = vadd.f32 %v1376, %v1390
        %v1393 = vadd.f32 %v1380, %v1391
        %v1394 = vlaneseq
        %v1395 = vand.u32 %v1394, 127
        %vm1396 = vcmp.lt.s32.totalorder %v1395, 16
        %v1397 = vsel %vm1396, %v1392, -inf
        %v1398 = vsel %vm1396, %v1393, -inf
        %1399 = vmax.xlane.f32.xlu0 %v1397
        %v1400 = vpop.xlane.xlu0 %1399
        %1401 = vmax.xlane.f32.xlu0 %v1398
        %v1402 = vpop.xlane.xlu0 %1401
        %v1403 = vsub.f32 %v1392, %v1400
        %v1404 = vsub.f32 %v1393, %v1402
        %v1405 = vmul.f32 %v1403, 1.442695
        %v1406 = vpow.pop %v1405
        %v1407 = vmul.f32 %v1404, 1.442695
        %v1408 = vpow.pop %v1407
        %v1409 = vsel %vm1396, %v1406, 0.0
        %v1410 = vsel %vm1396, %v1408, 0.0
        %1411 = vadd.xlane.f32.xlu0 %v1409
        %v1412 = vpop.xlane.xlu0 %1411
        %1413 = vadd.xlane.f32.xlu0 %v1410
        %v1414 = vpop.xlane.xlu0 %1413
        %v1415 = vrcp.pop %v1412
        %v1416 = vrcp.pop %v1414
        %v1417 = vmul.f32 %v1409, %v1415
        %v1418 = vmul.f32 %v1410, %v1416
        %1419 = vst [vmem:[%s534] sm:$0xff] %v1417
        %1420 = vst [vmem:[%s534 + $0x8] sm:$0xff] %v1418
        %v1421 = vpack.c.bf16 %v1418, %v1417
        %v1422 = vld [vmem:[#allocation11] sm:$0xff]
        %v1423 = vld [vmem:[#allocation11 + $0x8] sm:$0xff]
        %v1424 = vld [vmem:[#allocation11 + $0x10] sm:$0xff]
        %v1425 = vld [vmem:[#allocation11 + $0x18] sm:$0xff]
        %v1426 = vld [vmem:[#allocation11 + $0x20] sm:$0xff]
        %v1427 = vld [vmem:[#allocation11 + $0x28] sm:$0xff]
        %v1428 = vld [vmem:[#allocation11 + $0x30] sm:$0xff]
        %v1429 = vld [vmem:[#allocation11 + $0x38] sm:$0xff]
        %v1430 = vld [vmem:[#allocation11 + $0x40] sm:$0xff]
        %v1431 = vld [vmem:[#allocation11 + $0x48] sm:$0xff]
        %v1432 = vld [vmem:[#allocation11 + $0x50] sm:$0xff]
        %v1433 = vld [vmem:[#allocation11 + $0x58] sm:$0xff]
        %v1434 = vld [vmem:[#allocation11 + $0x60] sm:$0xff]
        %v1435 = vld [vmem:[#allocation11 + $0x68] sm:$0xff]
        %v1436 = vld [vmem:[#allocation11 + $0x70] sm:$0xff]
        %v1437 = vld [vmem:[#allocation11 + $0x78] sm:$0xff]
        %v1454 = vunpack.c.l.b16 %v1422
        %v1455 = vunpack.c.h.b16 %v1422
        %v1456 = vunpack.c.l.b16 %v1423
        %v1457 = vunpack.c.h.b16 %v1423
        %v1458 = vunpack.c.l.b16 %v1424
        %v1459 = vunpack.c.h.b16 %v1424
        %v1460 = vunpack.c.l.b16 %v1425
        %v1461 = vunpack.c.h.b16 %v1425
        %v1462 = vunpack.c.l.b16 %v1426
        %v1463 = vunpack.c.h.b16 %v1426
        %v1464 = vunpack.c.l.b16 %v1427
        %v1465 = vunpack.c.h.b16 %v1427
        %v1466 = vunpack.c.l.b16 %v1428
        %v1467 = vunpack.c.h.b16 %v1428
        %v1468 = vunpack.c.l.b16 %v1429
        %v1469 = vunpack.c.h.b16 %v1429
        %v1470 = vunpack.c.l.b16 %v1430
        %v1471 = vunpack.c.h.b16 %v1430
        %v1472 = vunpack.c.l.b16 %v1431
        %v1473 = vunpack.c.h.b16 %v1431
        %v1474 = vunpack.c.l.b16 %v1432
        %v1475 = vunpack.c.h.b16 %v1432
        %v1476 = vunpack.c.l.b16 %v1433
        %v1477 = vunpack.c.h.b16 %v1433
        %v1478 = vunpack.c.l.b16 %v1434
        %v1479 = vunpack.c.h.b16 %v1434
        %v1480 = vunpack.c.l.b16 %v1435
        %v1481 = vunpack.c.h.b16 %v1435
        %v1482 = vunpack.c.l.b16 %v1436
        %v1483 = vunpack.c.h.b16 %v1436
        %v1484 = vunpack.c.l.b16 %v1437
        %v1485 = vunpack.c.h.b16 %v1437
        %v1486 = vpack.c.b16 %v1456, %v1454
        %v1487 = vpack.c.b16 %v1457, %v1455
        %v1488 = vpack.c.b16 %v1460, %v1458
        %v1489 = vpack.c.b16 %v1461, %v1459
        %v1490 = vpack.c.b16 %v1464, %v1462
        %v1491 = vpack.c.b16 %v1465, %v1463
        %v1492 = vpack.c.b16 %v1468, %v1466
        %v1493 = vpack.c.b16 %v1469, %v1467
        %v1494 = vpack.c.b16 %v1472, %v1470
        %v1495 = vpack.c.b16 %v1473, %v1471
        %v1496 = vpack.c.b16 %v1476, %v1474
        %v1497 = vpack.c.b16 %v1477, %v1475
        %v1498 = vpack.c.b16 %v1480, %v1478
        %v1499 = vpack.c.b16 %v1481, %v1479
        %v1500 = vpack.c.b16 %v1484, %v1482
        %v1501 = vpack.c.b16 %v1485, %v1483
        %1518 = vmatprep.subr.bf16.mxu0 %v1487
        %1519 = vmatpush1.bf16.msra.mxu0 %v1486
        %1520 = vmatprep.subr.bf16.mxu0 %v1489
        %1521 = vmatpush1.bf16.msra.mxu0 %v1488
        %1522 = vmatprep.subr.bf16.mxu0 %v1491
        %1523 = vmatpush1.bf16.msra.mxu0 %v1490
        %1524 = vmatprep.subr.bf16.mxu0 %v1493
        %1525 = vmatpush1.bf16.msra.mxu0 %v1492
        %1526 = vmatprep.subr.bf16.mxu0 %v1495
        %1527 = vmatpush1.bf16.msra.mxu0 %v1494
        %1528 = vmatprep.subr.bf16.mxu0 %v1497
        %1529 = vmatpush1.bf16.msra.mxu0 %v1496
        %1530 = vmatprep.subr.bf16.mxu0 %v1499
        %1531 = vmatpush1.bf16.msra.mxu0 %v1498
        %1532 = vmatprep.subr.bf16.mxu0 %v1501
        %1533 = vmatpush1.bf16.msra.mxu0 %v1500
        %1534 = vmatprep.subr.bf16.mxu0 0
        %1535 = vmatpush1.bf16.msra.mxu0 0
        %1536 = vmatprep.subr.bf16.mxu0 0
        %1537 = vmatpush1.bf16.msra.mxu0 0
        %1538 = vmatprep.subr.bf16.mxu0 0
        %1539 = vmatpush1.bf16.msra.mxu0 0
        %1540 = vmatprep.subr.bf16.mxu0 0
        %1541 = vmatpush1.bf16.msra.mxu0 0
        %1542 = vmatprep.subr.bf16.mxu0 0
        %1543 = vmatpush1.bf16.msra.mxu0 0
        %1544 = vmatprep.subr.bf16.mxu0 0
        %1545 = vmatpush1.bf16.msra.mxu0 0
        %1546 = vmatprep.subr.bf16.mxu0 0
        %1547 = vmatpush1.bf16.msra.mxu0 0
        %1548 = vmatprep.subr.bf16.mxu0 0
        %1549 = vmatpush1.bf16.msra.mxu0 0
        %1550 = vmatprep.mubr.bf16.mxu0 0
        %1551 = vmatmul.mubr.bf16.gmra.mrb[0].mxu0 %v1421
        %v1552 = vpop.f32.mrb[0].mxu0
        %v1553 = vadd.f32 0.0, %v1552
        %v1554 = vpop.f32.mrb[0].mxu0
        %v1555 = vadd.f32 0.0, %v1554
        %v1556 = vpop.f32.mrb[0].mxu0
        %v1557 = vadd.f32 0.0, %v1556
        %v1558 = vpop.f32.mrb[0].mxu0
        %v1559 = vadd.f32 0.0, %v1558
        %1560 = vdwg.mxu0
        %v1561 = vmax.f32 %v1553, %v1555
        %1562 = vmax.xlane.f32.xlu0 %v1561
        %v1563 = vpop.xlane.xlu0 %1562
        %v1564 = vmax.f32 %v1557, %v1559
        %1565 = vmax.xlane.f32.xlu0 %v1564
        %v1566 = vpop.xlane.xlu0 %1565
        %v1567 = vsub.f32 %v1553, %v1563
        %v1568 = vsub.f32 %v1555, %v1563
        %v1569 = vsub.f32 %v1557, %v1566
        %v1570 = vsub.f32 %v1559, %v1566
        %v1571 = vmul.f32 %v1567, 1.442695
        %v1572 = vpow.pop %v1571
        %v1573 = vmul.f32 %v1568, 1.442695
        %v1574 = vpow.pop %v1573
        %v1575 = vmul.f32 %v1569, 1.442695
        %v1576 = vpow.pop %v1575
        %v1577 = vmul.f32 %v1570, 1.442695
        %v1578 = vpow.pop %v1577
        %v1579 = vadd.f32 %v1572, %v1574
        %1580 = vadd.xlane.f32.xlu0 %v1579
        %v1581 = vpop.xlane.xlu0 %1580
        %v1582 = vadd.f32 %v1576, %v1578
        %1583 = vadd.xlane.f32.xlu0 %v1582
        %v1584 = vpop.xlane.xlu0 %1583
        %v1585 = vrcp.pop %v1581
        %v1586 = vrcp.pop %v1584
        %v1587 = vmul.f32 %v1572, %v1585
        %v1588 = vmul.f32 %v1574, %v1585
        %v1589 = vmul.f32 %v1576, %v1586
        %v1590 = vmul.f32 %v1578, %v1586
        %v1591 = vpack.c.bf16 %v1589, %v1587
        %v1592 = vpack.c.bf16 %v1590, %v1588
        %v1595 = vunpack.c.l.b16 %v1591
        %v1596 = vunpack.c.l.b16 %v1592
        %v1597 = vunpack.c.h.b16 %v1591
        %v1598 = vunpack.c.h.b16 %v1592
        %v1599 = vpack.c.b16 %v1596, %v1595
        %v1600 = vpack.c.b16 %v1598, %v1597
        %1603 = vst [vmem:[%s541] sm:$0xff] %v1599
        %1604 = vst [vmem:[%s541 + $0x8] sm:$0xff] %v1600
        %v1605 = vlog2.pop %v1581
        %v1606 = vmul.f32 %v1605, 0.6931472
        %v1607 = vlog2.pop %v1584
        %v1608 = vmul.f32 %v1607, 0.6931472
        %v1609 = vsub.f32 %v1567, %v1606
        %v1610 = vsub.f32 %v1568, %v1606
        %v1611 = vsub.f32 %v1569, %v1608
        %v1612 = vsub.f32 %v1570, %v1608
        %v1613 = vld [vmem:[%s468] sm:$0xff]
        %v1614 = vld [vmem:[%s468 + $0x8] sm:$0xff]
        %v1615 = vunpack.c.l.bf16 %v1613
        %v1616 = vunpack.c.h.bf16 %v1613
        %v1617 = vunpack.c.l.bf16 %v1614
        %v1618 = vunpack.c.h.bf16 %v1614
        %v1619 = vmul.f32 %v1615, %v1609
        %v1620 = vmul.f32 %v1616, %v1610
        %v1621 = vmul.f32 %v1617, %v1611
        %v1622 = vmul.f32 %v1618, %v1612
        %v1623 = vadd.f32 %v1619, %v1620
        %1624 = vadd.xlane.f32.xlu0 %v1623
        %v1625 = vpop.xlane.xlu0 %1624
        %v1626 = vadd.f32 %v1621, %v1622
        %1627 = vadd.xlane.f32.xlu0 %v1626
        %v1628 = vpop.xlane.xlu0 %1627
        %v1629 = vsub.f32 0.0, %v1625
        %v1630 = vsub.f32 0.0, %v1628
        %v1631 = vld [vmem:[%s9] sm:$0xff]
        %v1632 = vmul.f32 %v1385, %v1385
        %v1633 = vmul.f32 %v1387, %v1387
        %v1634 = vlaneseq
        %v1635 = vshrl.u32 %v1634, 7
        %v1636 = vsub.s32 1, %v1635
        %v1637 = vrot.slane %v1631, %v1636
        %v1638 = vmul.f32 %v1632, %v1637
        %v1639 = vmul.f32 %v1633, %v1637
        %v1640 = vlaneseq
        %v1641 = vshrl.u32 %v1640, 7
        %v1642 = vsub.s32 0, %v1641
        %v1643 = vrot.slane %v1631, %v1642
        %v1644 = vsub.f32 %v1643, %v1376
        %v1645 = vsub.f32 %v1643, %v1380
        %v1646 = vmul.f32 %v1644, %v1644
        %v1647 = vmul.f32 %v1645, %v1645
        %v1648 = vmul.f32 %v1646, %v1637
        %v1649 = vmul.f32 %v1647, %v1637
        %v1650 = vadd.f32 %v1638, %v1648
        %v1651 = vadd.f32 %v1639, %v1649
        %v1652 = vlaneseq
        %v1653 = vshrl.u32 %v1652, 7
        %v1654 = vsub.s32 2, %v1653
        %v1655 = vrot.slane %v1631, %v1654
        %v1656 = vadd.f32 %v1650, %v1655
        %v1657 = vadd.f32 %v1651, %v1655
        %v1658 = vmul.f32 %v1378, 2.0
        %v1659 = vmul.f32 %v1382, 2.0
        %v1660 = vsub.f32 %v1656, %v1658
        %v1661 = vsub.f32 %v1657, %v1659
        %1662 = vadd.xlane.f32.xlu0 %v1660
        %v1663 = vpop.xlane.xlu0 %1662
        %1664 = vadd.xlane.f32.xlu0 %v1661
        %v1665 = vpop.xlane.xlu0 %1664
        %v1666 = vsub.f32 %v1663, 16.0
        %v1667 = vsub.f32 %v1665, 16.0
        %v1668 = vmul.f32 %v1666, 0.5
        %v1669 = vmul.f32 %v1667, 0.5
        %vm1670 = vcmp.eq.s32.totalorder %v1395, 0
        %vm1671 = vcmp.eq.s32.totalorder %v1395, 1
        %vm1672 = vcmp.eq.s32.totalorder %v1395, 2
        %v1673 = vadd.f32 %v1629, %v1668
        %v1674 = vadd.f32 %v1630, %v1669
        %v1675 = vsel %vm1672, %v1673, 0.0
        %v1676 = vsel %vm1672, %v1674, 0.0
        %v1677 = vsel %vm1671, %v1668, %v1675
        %v1678 = vsel %vm1671, %v1669, %v1676
        %v1679 = vsel %vm1670, %v1629, %v1677
        %v1680 = vsel %vm1670, %v1630, %v1678
        %1681 = vst [vmem:[%s548] sm:$0xff] %v1679
        %1682 = vst [vmem:[%s548 + $0x8] sm:$0xff] %v1680
        %s1683 = sand.u32 %s266, 1
        %s1684 = scalar_lea.sflag [#allocation4], %s1683
        %s1685 = sand.u32 %s266, 1
        %s1686 = smul.addr %s1685, 16
        %s1687 = scalar_lea.vmem [#allocation13], %s1686
        %s1688 = sand.u32 %s38, 1
        %s1689 = scalar_lea.sflag [#allocation15], %s1688
        %s1690 = sand.u32 %s292, 1
        %s1691 = smul.addr %s1690, 16
        %s1692 = scalar_lea.vmem [#allocation14], %s1691
        %s1693 = sand.u32 %s38, 1
        %s1694 = scalar_lea.sflag [#allocation15], %s1693
        %s1695 = sand.u32 %s318, 1
        %s1696 = smul.addr %s1695, 16
        %s1697 = scalar_lea.vmem [#allocation16], %s1696
        // Predicated region
        $region85: #{tpu_custom_call.1} parent=59 // pred_check
          %p1698 = pneg %p276
        $region86: #{tpu_custom_call.1} parent=59 // pred_check_branch
          %1700 = sbr.rel (%p1698) target = $region88
        $region87: #{tpu_custom_call.1} parent=59 // pred_region
          %s1701 = smul.u32 2, %s38
          %s1703 = ssub.s32 256, 256
          %1704 = vsyncadd %s1684, %s1703
          %s1705 = smul.addr %s1701, 128
          %s1706 = scalar_lea.hbm %s10, %s1705
          %s1707 = sshll.u32 %s1687, 4
          %s1708 = int_to_ptr.vmem [resolvable:$true] %s1707
          %1713 = dma.vmem_to_hbm [thread:$0]  %s1708, 256, %s1706, %s1684, 128, 128, 8
        $region88: #{tpu_custom_call.1} parent=59 // pred_fallthru
          _
        // Predicated region
        $region89: #{tpu_custom_call.1} parent=59 // pred_check
          %p1714 = pneg %p302
        $region90: #{tpu_custom_call.1} parent=59 // pred_check_branch
          %1716 = sbr.rel (%p1714) target = $region92
        $region91: #{tpu_custom_call.1} parent=59 // pred_region
          %s1717 = smul.u32 2, %s38
          %s1719 = ssub.s32 256, 256
          %1720 = vsyncadd %s1689, %s1719
          %s1721 = smul.addr %s1717, 2
          %s1722 = smul.addr %s1721, 64
          %s1723 = scalar_lea.hbm %s11, %s1722
          %s1724 = sshll.u32 %s1692, 4
          %s1725 = int_to_ptr.vmem [resolvable:$true] %s1724
          %1730 = dma.vmem_to_hbm [thread:$0]  %s1725, 256, %s1723, %s1689, 128, 128, 8
        $region92: #{tpu_custom_call.1} parent=59 // pred_fallthru
          _
        // Predicated region
        $region93: #{tpu_custom_call.1} parent=59 // pred_check
          %p1731 = pneg %p328
        $region94: #{tpu_custom_call.1} parent=59 // pred_check_branch
          %1733 = sbr.rel (%p1731) target = $region96
        $region95: #{tpu_custom_call.1} parent=59 // pred_region
          %s1734 = smul.u32 2, %s38
          %s1736 = ssub.s32 256, 256
          %1737 = vsyncadd %s1694, %s1736
          %s1738 = smul.addr %s1734, 128
          %s1739 = scalar_lea.hbm %s12, %s1738
          %s1740 = sshll.u32 %s1697, 4
          %s1741 = int_to_ptr.vmem [resolvable:$true] %s1740
          %1746 = dma.vmem_to_hbm [thread:$0]  %s1741, 256, %s1739, %s1694, 128, 128, 8
        $region96: #{tpu_custom_call.1} parent=59 // pred_fallthru
          _
      $region60: #{tpu_custom_call.1} parent=5 // pred_fallthru
        _
      %p1747 = scmp.le.s32.totalorder 2, %s33
      // Predicated region
      $region97: #{tpu_custom_call.1} parent=5 // pred_check
        %p1748 = pneg %p1747
      $region98: #{tpu_custom_call.1} parent=5 // pred_check_branch
        %1750 = sbr.rel (%p1748) target = $region100
      $region99: #{tpu_custom_call.1} parent=5 // pred_region
        %s1751 = ssub.s32 %s33, 2
        // Predicated region
        $region101: #{tpu_custom_call.1} parent=99 // pred_check
          %p1752 = pneg %p282
        $region102: #{tpu_custom_call.1} parent=99 // pred_check_branch
          %1754 = sbr.rel (%p1752) target = $region104
        $region103: #{tpu_custom_call.1} parent=99 // pred_region
          %s1755 = sand.u32 %s267, 1
          %s1756 = scalar_lea.sflag [#allocation4], %s1755
          %s1757 = sand.u32 %s267, 1
          %s1758 = smul.addr %s1757, 16
          %s1759 = scalar_lea.vmem [#allocation13], %s1758
          %1760 = dma.done %s1756, 256
        $region104: #{tpu_custom_call.1} parent=99 // pred_fallthru
          _
        // Predicated region
        $region105: #{tpu_custom_call.1} parent=99 // pred_check
          %p1761 = pneg %p308
        $region106: #{tpu_custom_call.1} parent=99 // pred_check_branch
          %1763 = sbr.rel (%p1761) target = $region108
        $region107: #{tpu_custom_call.1} parent=99 // pred_region
          %s1764 = sand.u32 %s39, 1
          %s1765 = scalar_lea.sflag [#allocation15], %s1764
          %s1766 = sand.u32 %s293, 1
          %s1767 = smul.addr %s1766, 16
          %s1768 = scalar_lea.vmem [#allocation14], %s1767
          %1769 = dma.done %s1765, 256
        $region108: #{tpu_custom_call.1} parent=99 // pred_fallthru
          _
        // Predicated region
        $region109: #{tpu_custom_call.1} parent=99 // pred_check
          %p1770 = pneg %p334
        $region110: #{tpu_custom_call.1} parent=99 // pred_check_branch
          %1772 = sbr.rel (%p1770) target = $region112
        $region111: #{tpu_custom_call.1} parent=99 // pred_region
          %s1773 = sand.u32 %s39, 1
          %s1774 = scalar_lea.sflag [#allocation15], %s1773
          %s1775 = sand.u32 %s319, 1
          %s1776 = smul.addr %s1775, 16
          %s1777 = scalar_lea.vmem [#allocation16], %s1776
          %1778 = dma.done %s1774, 256
        $region112: #{tpu_custom_call.1} parent=99 // pred_fallthru
          _
      $region100: #{tpu_custom_call.1} parent=5 // pred_fallthru
        _
    $region6: #{tpu_custom_call.1} parent=1 // loop_footer
      %s37 = sadd.s32 1, %s33
    $region7: #{tpu_custom_call.1} parent=1 // loop_footer_branch
      %32 = sbr.rel target = $region3
    $region8: #{tpu_custom_call.1} parent=1 // loop_exit
      _
    %1779 = vsyncpa [#allocation3], 1
    %s1780 = scalar_lea.sflag [#allocation3], 1
    %1781 = vsyncpa %s1780, 1
    %1782 = vsyncpa [#allocation6], 1
    %s1783 = scalar_lea.sflag [#allocation6], 1
    %1784 = vsyncpa %s1783, 1
    %1785 = vsyncpa [#allocation9], 1
    %1786 = vsyncpa [#allocation12], 1
    %1787 = vsyncpa [#allocation4], 1
    %s1788 = scalar_lea.sflag [#allocation4], 1
    %1789 = vsyncpa %s1788, 1
    %1790 = vsyncpa [#allocation15], 1
    %s1791 = scalar_lea.sflag [#allocation15], 1
    %1792 = vsyncpa %s1791, 1

</llo_original>
